<compile_context>
chip_gen: v7x
topology: tpu7x:2x2x1
jax: 0.10.0
libtpu: 0.0.40
codegen_flags: <defaults>
</compile_context>

<pallas_src>
from functools import partial

import jax
import jax.numpy as jnp
from jax import lax
from jax.experimental import pallas as pl
from jax.experimental.pallas import tpu as pltpu


def mlp_kernel(x_ref,
               w1_ref, b1_ref,
               w2_ref, b2_ref,
               w3_ref, b3_ref,
               w4_ref, b4_ref,
               w5_ref, b5_ref,
               w67_ref, b67_ref,
               o_ref):
    # x block: (TB, F) f32 -> cast to bf16 in-kernel (no wrapper-side pass).
    x = x_ref[...].astype(jnp.bfloat16)

    # Layer 1: contract over F (dim 1 of both operands) -> (16, TB).
    # Batch lands on the lane axis; everything downstream is lane-local.
    h = lax.dot_general(w1_ref[...], x, (((1,), (1,)), ((), ())),
                        preferred_element_type=jnp.float32) + b1_ref[...]
    h = jnp.maximum(h, 0.0).astype(jnp.bfloat16)

    def dense_relu(w_ref, b_ref, h_bf16):
        z = jnp.dot(w_ref[...], h_bf16,
                    preferred_element_type=jnp.float32) + b_ref[...]
        return jnp.maximum(z, 0.0).astype(jnp.bfloat16)

    h = dense_relu(w2_ref, b2_ref, h)    # (32,  TB)
    h = dense_relu(w3_ref, b3_ref, h)    # (64,  TB)
    h = dense_relu(w4_ref, b4_ref, h)    # (128, TB)
    h = dense_relu(w5_ref, b5_ref, h)    # (256, TB)

    # output_layer1/output_layer2 fused into one (1, 256) matmul, then sigmoid.
    out = jax.nn.sigmoid(
        jnp.dot(w67_ref[...], h, preferred_element_type=jnp.float32)
        + b67_ref[...])
    o_ref[...] = out.astype(o_ref.dtype)          # (1, TB) lane-dense store


def prepare_params(params):
    """One-time preprocessing (call once, outside the per-forward path).

    params: PyTorch-layout list of (W [out, in], b [out]) for the 7 layers.
    Returns the flat tuple of kernel operands:
      w1..w5, w67 in bf16; b1..b5, b67 as (out, 1) f32.
    """
    (w1, b1), (w2, b2), (w3, b3), (w4, b4), (w5, b5), (w6, b6), (w7, b7) = params

    # Exact algebraic fusion of output_layer1/output_layer2 (no nonlinearity
    # between them): y = W7 (W6 h + b6) + b7 = (W7 W6) h + (W7 b6 + b7).
    w67 = w7 @ w6                                # (1, 256)
    b67 = (w7 @ b6 + b7).reshape(1, 1)           # (1, 1)

    flat = []
    for w, b in [(w1, b1), (w2, b2), (w3, b3), (w4, b4), (w5, b5)]:
        flat.append(w.astype(jnp.bfloat16))                      # MXU operand
        flat.append(b.reshape(-1, 1).astype(jnp.float32))        # f32 bias add
    flat.append(w67.astype(jnp.bfloat16))
    flat.append(b67.astype(jnp.float32))
    return tuple(jax.device_put(a) for a in flat)


def _round_up(x, m):
    return ((x + m - 1) // m) * m


def _choose_tb(batch, tb_max):
    # Big tiles (step-overhead bound kernel), but keep >= 2 grid tiles when the
    # batch allows it so v7x's two TensorCores both get work; never below 256.
    return min(tb_max, max(256, _round_up(pl.cdiv(batch, 2), 256)))


@partial(jax.jit, static_argnames=("tb_max",))
def custom_model_forward(x, prepared, *, tb_max=2048):
    """x: [B, F] float32. prepared: output of prepare_params()."""
    B, F = x.shape
    tb = _choose_tb(B, tb_max)
    num_tiles = pl.cdiv(B, tb)

    in_specs = [pl.BlockSpec((tb, F), lambda i: (i, 0))]     # batch-tiled input
    for arr in prepared:
        # Constant index_map -> weights/biases stay VMEM-resident across steps.
        in_specs.append(pl.BlockSpec(arr.shape, lambda i: (0, 0)))

    out_specs = pl.BlockSpec((1, tb), lambda i: (0, i))
    out_shape = jax.ShapeDtypeStruct((1, num_tiles * tb), jnp.float32)

    b_pad = num_tiles * tb
    layer_dims = [F, 16, 32, 64, 128, 256, 1]
    flops = 2 * b_pad * sum(a * c for a, c in zip(layer_dims[:-1], layer_dims[1:]))
    bytes_accessed = (x.size * x.dtype.itemsize
                      + sum(a.size * a.dtype.itemsize for a in prepared)
                      + b_pad * 4)
    cost = pl.CostEstimate(flops=flops, transcendentals=b_pad,
                           bytes_accessed=bytes_accessed)

    out = pl.pallas_call(
        mlp_kernel,
        grid=(num_tiles,),
        in_specs=in_specs,
        out_specs=out_specs,
        out_shape=out_shape,
        compiler_params=pltpu.CompilerParams(
            dimension_semantics=("parallel",),   # shard batch tiles across TCs
            vmem_limit_bytes=32 << 20),          # well under physical on all gens
        cost_estimate=cost,
    )(x, *prepared)

    # Padded lanes of the last partial tile contain garbage (lane-local only);
    # slice them off here.
    return out.reshape(-1, 1)[:B]


def init_params(key, input_size):
    """PyTorch-style layers: W [out, in], b [out], uniform(-1/sqrt(fan_in), +)."""
    dims = [input_size, 16, 32, 64, 128, 256, 64, 1]
    params = []
    for i in range(len(dims) - 1):
        fan_in, fan_out = dims[i], dims[i + 1]
        key, kw, kb = jax.random.split(key, 3)
        bound = 1.0 / jnp.sqrt(jnp.float32(fan_in))
        w = jax.random.uniform(kw, (fan_out, fan_in), jnp.float32, -bound, bound)
        b = jax.random.uniform(kb, (fan_out,), jnp.float32, -bound, bound)
        params.append((w, b))
    return params


def reference_forward(x, params):
    """Pure f32 reference (matches the PyTorch module exactly)."""
    h = x
    for i, (w, b) in enumerate(params):
        h = h @ w.T + b
        if i < 5:
            h = jnp.maximum(h, 0.0)
    return jax.nn.sigmoid(h)


def matched_reference(x, params):
    """Reference with the kernel's numerics: fused last layers, bf16 operands,
    f32 accumulation / bias / ReLU / sigmoid."""
    (w1, b1), (w2, b2), (w3, b3), (w4, b4), (w5, b5), (w6, b6), (w7, b7) = params
    w67 = w7 @ w6
    b67 = w7 @ b6 + b7

    def dense(h, w, b):
        return jnp.dot(h.astype(jnp.bfloat16), w.T.astype(jnp.bfloat16),
                       preferred_element_type=jnp.float32) + b

    h = x
    for w, b in [(w1, b1), (w2, b2), (w3, b3), (w4, b4), (w5, b5)]:
        h = jnp.maximum(dense(h, w, b), 0.0)
    return jax.nn.sigmoid(dense(h, w67, b67)).reshape(-1, 1)


if __name__ == "__main__":
    key = jax.random.PRNGKey(0)
    input_size = 8   # stands in for len(df_train.columns)
    batch = 300      # 2-tile grid (megacore) with a ragged last tile at tb=256

    k_x, k_p = jax.random.split(key)
    x = jax.random.normal(k_x, (batch, input_size), jnp.float32)
    params = init_params(k_p, input_size)

    prepared = prepare_params(params)            # one-time, outside hot path
    out = custom_model_forward(x, prepared)
    out = jax.block_until_ready(out)

    assert out.shape == (batch, 1), out.shape

    ref_matched = matched_reference(x, params)   # same bf16/f32-acc numerics
    ref_f32 = reference_forward(x, params)       # original f32 semantics
    assert jnp.allclose(out, ref_matched, atol=1e-4, rtol=1e-4), \
        float(jnp.max(jnp.abs(out - ref_matched)))
    assert jnp.allclose(out, ref_f32, atol=2e-2, rtol=2e-2), \
        float(jnp.max(jnp.abs(out - ref_f32)))

    print("KERNEL_OK")
</pallas_src>

<mosaic_0001>
module attributes {stable_mosaic.version = 11 : i64} {
  func.func @mlp_kernel(%arg0: i32, %arg1: memref<256x8xf32, #tpu.memory_space<vmem>>, %arg2: memref<16x8xbf16, #tpu.memory_space<vmem>>, %arg3: memref<16x1xf32, #tpu.memory_space<vmem>>, %arg4: memref<32x16xbf16, #tpu.memory_space<vmem>>, %arg5: memref<32x1xf32, #tpu.memory_space<vmem>>, %arg6: memref<64x32xbf16, #tpu.memory_space<vmem>>, %arg7: memref<64x1xf32, #tpu.memory_space<vmem>>, %arg8: memref<128x64xbf16, #tpu.memory_space<vmem>>, %arg9: memref<128x1xf32, #tpu.memory_space<vmem>>, %arg10: memref<256x128xbf16, #tpu.memory_space<vmem>>, %arg11: memref<256x1xf32, #tpu.memory_space<vmem>>, %arg12: memref<1x256xbf16, #tpu.memory_space<vmem>>, %arg13: memref<1x1xf32, #tpu.memory_space<vmem>>, %arg14: memref<1x256xf32, #tpu.memory_space<vmem>>) attributes {dimension_semantics = [#tpu.dimension_semantics<parallel>], iteration_bounds = array<i64: 2>, scalar_prefetch = 0 : i64, scratch_operands = 0 : i64, tpu.core_type = #tpu.core_type<tc>, window_params = [{transform_indices = @transform_0, window_bounds = array<i64: 256, 8>}, {pipeline_mode = #tpu.pipeline_mode<synchronous>, transform_indices = @transform_1, window_bounds = array<i64: 16, 8>}, {pipeline_mode = #tpu.pipeline_mode<synchronous>, transform_indices = @transform_2, window_bounds = array<i64: 16, 1>}, {pipeline_mode = #tpu.pipeline_mode<synchronous>, transform_indices = @transform_3, window_bounds = array<i64: 32, 16>}, {pipeline_mode = #tpu.pipeline_mode<synchronous>, transform_indices = @transform_4, window_bounds = array<i64: 32, 1>}, {pipeline_mode = #tpu.pipeline_mode<synchronous>, transform_indices = @transform_5, window_bounds = array<i64: 64, 32>}, {pipeline_mode = #tpu.pipeline_mode<synchronous>, transform_indices = @transform_6, window_bounds = array<i64: 64, 1>}, {pipeline_mode = #tpu.pipeline_mode<synchronous>, transform_indices = @transform_7, window_bounds = array<i64: 128, 64>}, {pipeline_mode = #tpu.pipeline_mode<synchronous>, transform_indices = @transform_8, window_bounds = array<i64: 128, 1>}, {pipeline_mode = #tpu.pipeline_mode<synchronous>, transform_indices = @transform_9, window_bounds = array<i64: 256, 128>}, {pipeline_mode = #tpu.pipeline_mode<synchronous>, transform_indices = @transform_10, window_bounds = array<i64: 256, 1>}, {pipeline_mode = #tpu.pipeline_mode<synchronous>, transform_indices = @transform_11, window_bounds = array<i64: 1, 256>}, {pipeline_mode = #tpu.pipeline_mode<synchronous>, transform_indices = @transform_12, window_bounds = array<i64: 1, 1>}, {transform_indices = @transform_13, window_bounds = array<i64: 1, 256>}]} {
    %c0 = arith.constant 0 : index
    %c0_0 = arith.constant 0 : index
    %0 = vector.load %arg1[%c0, %c0_0] : memref<256x8xf32, #tpu.memory_space<vmem>>, vector<256x8xf32>
    %1 = arith.truncf %0 : vector<256x8xf32> to vector<256x8xbf16>
    %c0_1 = arith.constant 0 : index
    %c0_2 = arith.constant 0 : index
    %2 = vector.load %arg2[%c0_1, %c0_2] : memref<16x8xbf16, #tpu.memory_space<vmem>>, vector<16x8xbf16>
    %cst = arith.constant dense<0.000000e+00> : vector<16x256xf32>
    %3 = tpu.matmul %2, %1, %cst {dimension_numbers = #tpu.dot_dimension_numbers<[1], [1], [0], [0], [0, 0, 1, 0], [], []>} : vector<16x8xbf16>, vector<256x8xbf16>, vector<16x256xf32> -> vector<16x256xf32>
    %c0_3 = arith.constant 0 : index
    %c0_4 = arith.constant 0 : index
    %4 = vector.load %arg3[%c0_3, %c0_4] : memref<16x1xf32, #tpu.memory_space<vmem>>, vector<16x1xf32>
    %5 = vector.broadcast %4 : vector<16x1xf32> to vector<16x256xf32>
    %6 = arith.addf %3, %5 : vector<16x256xf32>
    %cst_5 = arith.constant 0.000000e+00 : f32
    %7 = vector.broadcast %cst_5 : f32 to vector<16x256xf32>
    %8 = arith.maximumf %6, %7 : vector<16x256xf32>
    %9 = arith.truncf %8 : vector<16x256xf32> to vector<16x256xbf16>
    %c0_6 = arith.constant 0 : index
    %c0_7 = arith.constant 0 : index
    %10 = vector.load %arg4[%c0_6, %c0_7] : memref<32x16xbf16, #tpu.memory_space<vmem>>, vector<32x16xbf16>
    %cst_8 = arith.constant dense<0.000000e+00> : vector<32x256xf32>
    %11 = tpu.matmul %10, %9, %cst_8 {dimension_numbers = #tpu.dot_dimension_numbers<[1], [0], [0], [1], [0, 0, 1, 1], [], []>} : vector<32x16xbf16>, vector<16x256xbf16>, vector<32x256xf32> -> vector<32x256xf32>
    %c0_9 = arith.constant 0 : index
    %c0_10 = arith.constant 0 : index
    %12 = vector.load %arg5[%c0_9, %c0_10] : memref<32x1xf32, #tpu.memory_space<vmem>>, vector<32x1xf32>
    %13 = vector.broadcast %12 : vector<32x1xf32> to vector<32x256xf32>
    %14 = arith.addf %11, %13 : vector<32x256xf32>
    %cst_11 = arith.constant 0.000000e+00 : f32
    %15 = vector.broadcast %cst_11 : f32 to vector<32x256xf32>
    %16 = arith.maximumf %14, %15 : vector<32x256xf32>
    %17 = arith.truncf %16 : vector<32x256xf32> to vector<32x256xbf16>
    %c0_12 = arith.constant 0 : index
    %c0_13 = arith.constant 0 : index
    %18 = vector.load %arg6[%c0_12, %c0_13] : memref<64x32xbf16, #tpu.memory_space<vmem>>, vector<64x32xbf16>
    %cst_14 = arith.constant dense<0.000000e+00> : vector<64x256xf32>
    %19 = tpu.matmul %18, %17, %cst_14 {dimension_numbers = #tpu.dot_dimension_numbers<[1], [0], [0], [1], [0, 0, 1, 1], [], []>} : vector<64x32xbf16>, vector<32x256xbf16>, vector<64x256xf32> -> vector<64x256xf32>
    %c0_15 = arith.constant 0 : index
    %c0_16 = arith.constant 0 : index
    %20 = vector.load %arg7[%c0_15, %c0_16] : memref<64x1xf32, #tpu.memory_space<vmem>>, vector<64x1xf32>
    %21 = vector.broadcast %20 : vector<64x1xf32> to vector<64x256xf32>
    %22 = arith.addf %19, %21 : vector<64x256xf32>
    %cst_17 = arith.constant 0.000000e+00 : f32
    %23 = vector.broadcast %cst_17 : f32 to vector<64x256xf32>
    %24 = arith.maximumf %22, %23 : vector<64x256xf32>
    %25 = arith.truncf %24 : vector<64x256xf32> to vector<64x256xbf16>
    %c0_18 = arith.constant 0 : index
    %c0_19 = arith.constant 0 : index
    %26 = vector.load %arg8[%c0_18, %c0_19] : memref<128x64xbf16, #tpu.memory_space<vmem>>, vector<128x64xbf16>
    %cst_20 = arith.constant dense<0.000000e+00> : vector<128x256xf32>
    %27 = tpu.matmul %26, %25, %cst_20 {dimension_numbers = #tpu.dot_dimension_numbers<[1], [0], [0], [1], [0, 0, 1, 1], [], []>} : vector<128x64xbf16>, vector<64x256xbf16>, vector<128x256xf32> -> vector<128x256xf32>
    %c0_21 = arith.constant 0 : index
    %c0_22 = arith.constant 0 : index
    %28 = vector.load %arg9[%c0_21, %c0_22] : memref<128x1xf32, #tpu.memory_space<vmem>>, vector<128x1xf32>
    %29 = vector.broadcast %28 : vector<128x1xf32> to vector<128x256xf32>
    %30 = arith.addf %27, %29 : vector<128x256xf32>
    %cst_23 = arith.constant 0.000000e+00 : f32
    %31 = vector.broadcast %cst_23 : f32 to vector<128x256xf32>
    %32 = arith.maximumf %30, %31 : vector<128x256xf32>
    %33 = arith.truncf %32 : vector<128x256xf32> to vector<128x256xbf16>
    %c0_24 = arith.constant 0 : index
    %c0_25 = arith.constant 0 : index
    %34 = vector.load %arg10[%c0_24, %c0_25] : memref<256x128xbf16, #tpu.memory_space<vmem>>, vector<256x128xbf16>
    %cst_26 = arith.constant dense<0.000000e+00> : vector<256x256xf32>
    %35 = tpu.matmul %34, %33, %cst_26 {dimension_numbers = #tpu.dot_dimension_numbers<[1], [0], [0], [1], [0, 0, 1, 1], [], []>} : vector<256x128xbf16>, vector<128x256xbf16>, vector<256x256xf32> -> vector<256x256xf32>
    %c0_27 = arith.constant 0 : index
    %c0_28 = arith.constant 0 : index
    %36 = vector.load %arg11[%c0_27, %c0_28] : memref<256x1xf32, #tpu.memory_space<vmem>>, vector<256x1xf32>
    %37 = vector.broadcast %36 : vector<256x1xf32> to vector<256x256xf32>
    %38 = arith.addf %35, %37 : vector<256x256xf32>
    %cst_29 = arith.constant 0.000000e+00 : f32
    %39 = vector.broadcast %cst_29 : f32 to vector<256x256xf32>
    %40 = arith.maximumf %38, %39 : vector<256x256xf32>
    %41 = arith.truncf %40 : vector<256x256xf32> to vector<256x256xbf16>
    %c0_30 = arith.constant 0 : index
    %c0_31 = arith.constant 0 : index
    %42 = vector.load %arg12[%c0_30, %c0_31] : memref<1x256xbf16, #tpu.memory_space<vmem>>, vector<1x256xbf16>
    %cst_32 = arith.constant dense<0.000000e+00> : vector<1x256xf32>
    %43 = tpu.matmul %42, %41, %cst_32 {dimension_numbers = #tpu.dot_dimension_numbers<[1], [0], [0], [1], [0, 0, 1, 1], [], []>} : vector<1x256xbf16>, vector<256x256xbf16>, vector<1x256xf32> -> vector<1x256xf32>
    %c0_33 = arith.constant 0 : index
    %c0_34 = arith.constant 0 : index
    %44 = vector.load %arg13[%c0_33, %c0_34] : memref<1x1xf32, #tpu.memory_space<vmem>>, vector<1x1xf32>
    %45 = vector.broadcast %44 : vector<1x1xf32> to vector<1x256xf32>
    %46 = arith.addf %43, %45 : vector<1x256xf32>
    %47 = arith.negf %46 : vector<1x256xf32>
    %48 = math.exp %47 : vector<1x256xf32>
    %cst_35 = arith.constant 1.000000e+00 : f32
    %49 = vector.broadcast %cst_35 : f32 to vector<1x256xf32>
    %50 = arith.addf %49, %48 : vector<1x256xf32>
    %51 = arith.divf %49, %50 : vector<1x256xf32>
    %c0_36 = arith.constant 0 : index
    %c0_37 = arith.constant 0 : index
    %52 = vector.load %arg14[%c0_36, %c0_37] : memref<1x256xf32, #tpu.memory_space<vmem>>, vector<1x256xf32>
    tpu.vector_store %arg14[%c0_36, %c0_37], %51 {strides = array<i32>} : memref<1x256xf32, #tpu.memory_space<vmem>>, vector<1x256xf32>,
    return
  }
  func.func @transform_0(%arg0: i32) -> (i32, i32) {
    %c0_i32 = arith.constant 0 : i32
    %c0_i32_0 = arith.constant 0 : i32
    return %arg0, %c0_i32 : i32, i32
  }
  func.func @transform_1(%arg0: i32) -> (i32, i32) {
    %c0_i32 = arith.constant 0 : i32
    %c0_i32_0 = arith.constant 0 : i32
    %c0_i32_1 = arith.constant 0 : i32
    return %c0_i32, %c0_i32_0 : i32, i32
  }
  func.func @transform_2(%arg0: i32) -> (i32, i32) {
    %c0_i32 = arith.constant 0 : i32
    %c0_i32_0 = arith.constant 0 : i32
    %c0_i32_1 = arith.constant 0 : i32
    return %c0_i32, %c0_i32_0 : i32, i32
  }
  func.func @transform_3(%arg0: i32) -> (i32, i32) {
    %c0_i32 = arith.constant 0 : i32
    %c0_i32_0 = arith.constant 0 : i32
    %c0_i32_1 = arith.constant 0 : i32
    return %c0_i32, %c0_i32_0 : i32, i32
  }
  func.func @transform_4(%arg0: i32) -> (i32, i32) {
    %c0_i32 = arith.constant 0 : i32
    %c0_i32_0 = arith.constant 0 : i32
    %c0_i32_1 = arith.constant 0 : i32
    return %c0_i32, %c0_i32_0 : i32, i32
  }
  func.func @transform_5(%arg0: i32) -> (i32, i32) {
    %c0_i32 = arith.constant 0 : i32
    %c0_i32_0 = arith.constant 0 : i32
    %c0_i32_1 = arith.constant 0 : i32
    return %c0_i32, %c0_i32_0 : i32, i32
  }
  func.func @transform_6(%arg0: i32) -> (i32, i32) {
    %c0_i32 = arith.constant 0 : i32
    %c0_i32_0 = arith.constant 0 : i32
    %c0_i32_1 = arith.constant 0 : i32
    return %c0_i32, %c0_i32_0 : i32, i32
  }
  func.func @transform_7(%arg0: i32) -> (i32, i32) {
    %c0_i32 = arith.constant 0 : i32
    %c0_i32_0 = arith.constant 0 : i32
    %c0_i32_1 = arith.constant 0 : i32
    return %c0_i32, %c0_i32_0 : i32, i32
  }
  func.func @transform_8(%arg0: i32) -> (i32, i32) {
    %c0_i32 = arith.constant 0 : i32
    %c0_i32_0 = arith.constant 0 : i32
    %c0_i32_1 = arith.constant 0 : i32
    return %c0_i32, %c0_i32_0 : i32, i32
  }
  func.func @transform_9(%arg0: i32) -> (i32, i32) {
    %c0_i32 = arith.constant 0 : i32
    %c0_i32_0 = arith.constant 0 : i32
    %c0_i32_1 = arith.constant 0 : i32
    return %c0_i32, %c0_i32_0 : i32, i32
  }
  func.func @transform_10(%arg0: i32) -> (i32, i32) {
    %c0_i32 = arith.constant 0 : i32
    %c0_i32_0 = arith.constant 0 : i32
    %c0_i32_1 = arith.constant 0 : i32
    return %c0_i32, %c0_i32_0 : i32, i32
  }
  func.func @transform_11(%arg0: i32) -> (i32, i32) {
    %c0_i32 = arith.constant 0 : i32
    %c0_i32_0 = arith.constant 0 : i32
    %c0_i32_1 = arith.constant 0 : i32
    return %c0_i32, %c0_i32_0 : i32, i32
  }
  func.func @transform_12(%arg0: i32) -> (i32, i32) {
    %c0_i32 = arith.constant 0 : i32
    %c0_i32_0 = arith.constant 0 : i32
    %c0_i32_1 = arith.constant 0 : i32
    return %c0_i32, %c0_i32_0 : i32, i32
  }
  func.func @transform_13(%arg0: i32) -> (i32, i32) {
    %c0_i32 = arith.constant 0 : i32
    %c0_i32_0 = arith.constant 0 : i32
    return %c0_i32, %arg0 : i32, i32
  }
}

</mosaic_0001>

<llo_original>
// kernel: custom_model_forward.1
$region0: #{custom_model_forward.1}
  #allocation0 [shape = 'u32[]', space=smem, size = 0x4, offset = 0x4, fixed_abs, tag = 'smem constant byte address 0x4 - core index']
  #allocation1 [shape = 'u32[144,128]{1,0:T(1,128)}', space=vmem, size = 0x12000, scoped, tag = 'internal scratch']
  #allocation2 [shape = 'f32[1,1]{1,0:T(1,128)S(1)}', space=vmem, size = 0x200, scoped, tag = 'scoped memory for custom_model_forward.1']
  %s0 = inlined_call_operand.vmem [shape: f32[300,8], index: 0, kind: input, shape index: {}]
  %s1 = inlined_call_operand.vmem [shape: bf16[16,8], index: 1, kind: input, shape index: {}]
  %s2 = inlined_call_operand.vmem [shape: f32[16,1], index: 2, kind: input, shape index: {}]
  %s3 = inlined_call_operand.vmem [shape: bf16[32,16], index: 3, kind: input, shape index: {}]
  %s4 = inlined_call_operand.vmem [shape: f32[32,1], index: 4, kind: input, shape index: {}]
  %s5 = inlined_call_operand.vmem [shape: bf16[64,32], index: 5, kind: input, shape index: {}]
  %s6 = inlined_call_operand.vmem [shape: f32[64,1], index: 6, kind: input, shape index: {}]
  %s7 = inlined_call_operand.vmem [shape: bf16[128,64], index: 7, kind: input, shape index: {}]
  %s8 = inlined_call_operand.vmem [shape: f32[128,1], index: 8, kind: input, shape index: {}]
  %s9 = inlined_call_operand.vmem [shape: bf16[256,128], index: 9, kind: input, shape index: {}]
  %s10 = inlined_call_operand.vmem [shape: f32[256,1], index: 10, kind: input, shape index: {}]
  %s11 = inlined_call_operand.vmem [shape: bf16[1,256], index: 11, kind: input, shape index: {}]
  %s12 = inlined_call_operand.<no memory space> [shape: f32[1,1], index: 12, kind: input, shape index: {}]
  %s13 = inlined_call_operand.vmem [shape: f32[1,512], index: 13, kind: output, shape index: {}]
  %s14 = sld [smem:[#allocation0]]
  $region85: #{custom_model_forward.1} parent=0
    _
  %s16 = ssub.s32 1, %s14
  %s17 = scalar_select 0, %s16, %s14
  %v18 = vstv %s12
  %19 = vst [vmem:[#allocation2] sm:$0x1] %v18
  loop: start=0, step=1, limit=4
  $region2: #{custom_model_forward.1} parent=0 // loop_pre_header
    _
  $region3: #{custom_model_forward.1} parent=0 // loop_header
    %s21 = sphi 0, %s25
    %p22 = scmp.ge.s32.totalorder %s21, 4
    %s31 = sphi 0, %s33
    %s34 = sphi 0, %s31
    %s35 = sphi 0, %s34
    %s51 = sphi 0, %s35
    %s55 = sphi 0, %s55
    %s57 = sphi 0, %s55
    %s58 = sphi 0, %s57
    %s72 = sphi 0, %s58
    %s76 = sphi 0, %s76
    %s78 = sphi 0, %s76
    %s79 = sphi 0, %s78
    %s93 = sphi 0, %s79
    %s97 = sphi 0, %s97
    %s99 = sphi 0, %s97
    %s100 = sphi 0, %s99
    %s114 = sphi 0, %s100
    %s118 = sphi 0, %s118
    %s120 = sphi 0, %s118
    %s121 = sphi 0, %s120
    %s135 = sphi 0, %s121
    %s139 = sphi 0, %s139
    %s141 = sphi 0, %s139
    %s142 = sphi 0, %s141
    %s156 = sphi 0, %s142
    %s160 = sphi 0, %s160
    %s162 = sphi 0, %s160
    %s163 = sphi 0, %s162
    %s177 = sphi 0, %s163
    %s181 = sphi 0, %s181
    %s183 = sphi 0, %s181
    %s184 = sphi 0, %s183
    %s198 = sphi 0, %s184
    %s202 = sphi 0, %s202
    %s204 = sphi 0, %s202
    %s205 = sphi 0, %s204
    %s219 = sphi 0, %s205
    %s223 = sphi 0, %s223
    %s225 = sphi 0, %s223
    %s226 = sphi 0, %s225
    %s240 = sphi 0, %s226
    %s244 = sphi 0, %s244
    %s246 = sphi 0, %s244
    %s247 = sphi 0, %s246
    %s261 = sphi 0, %s247
    %s265 = sphi 0, %s265
    %s267 = sphi 0, %s265
    %s268 = sphi 0, %s267
    %s282 = sphi 0, %s268
    %s286 = sphi 0, %s286
    %s288 = sphi 0, %s286
    %s289 = sphi 0, %s288
    %s303 = sphi 0, %s289
    %s309 = sphi 0, %s311
    %s312 = sphi 0, %s309
    %s313 = sphi 0, %s312
    %s329 = sphi 0, %s313
  $region4: #{custom_model_forward.1} parent=0 // loop_header_branch
    %24 = sbr.rel (%p22) target = $region8
  $region5: #{custom_model_forward.1} parent=0 // loop_body
    %s26 = ssub.s32 %s21, 1
    %s27 = ssub.s32 %s21, 2
    %s28 = sadd.s32 %s21, 1
    %s29 = ssub.s32 %s21, %s28
    %p30 = scmp.eq.s32.totalorder %s29, 0
    %s32 = sadd.s32 %s31, 1
    %s33 = scalar_select %p30, %s31, %s32
    %p36 = pneg %p30
    %p37 = scmp.eq.s32.totalorder %s21, 1
    %p38 = por %p36, %p37
    %p39 = scmp.ne.s32.totalorder %s31, %s34
    %p40 = scmp.eq.s32.totalorder %s21, 0
    %p41 = por %p39, %p40
    %p42 = scmp.ne.s32.totalorder %s31, %s34
    %p43 = scmp.eq.s32.totalorder %s26, 1
    %p44 = por %p42, %p43
    %p45 = scmp.ne.s32.totalorder %s34, %s35
    %p46 = scmp.eq.s32.totalorder %s26, 0
    %p47 = por %p45, %p46
    %p48 = scmp.ne.s32.totalorder %s34, %s35
    %p49 = scmp.eq.s32.totalorder %s27, 1
    %p50 = por %p48, %p49
    %p52 = scmp.ne.s32.totalorder %s35, %s51
    %p53 = scmp.eq.s32.totalorder %s27, 0
    %p54 = por %p52, %p53
    %s56 = sadd.s32 %s55, 1
    %p59 = scmp.eq.s32.totalorder %s21, 1
    %p60 = scmp.ne.s32.totalorder %s55, %s57
    %p61 = scmp.eq.s32.totalorder %s21, 0
    %p62 = por %p60, %p61
    %p63 = scmp.ne.s32.totalorder %s55, %s57
    %p64 = scmp.eq.s32.totalorder %s26, 1
    %p65 = por %p63, %p64
    %p66 = scmp.ne.s32.totalorder %s57, %s58
    %p67 = scmp.eq.s32.totalorder %s26, 0
    %p68 = por %p66, %p67
    %p69 = scmp.ne.s32.totalorder %s57, %s58
    %p70 = scmp.eq.s32.totalorder %s27, 1
    %p71 = por %p69, %p70
    %p73 = scmp.ne.s32.totalorder %s58, %s72
    %p74 = scmp.eq.s32.totalorder %s27, 0
    %p75 = por %p73, %p74
    %s77 = sadd.s32 %s76, 1
    %p80 = scmp.eq.s32.totalorder %s21, 1
    %p81 = scmp.ne.s32.totalorder %s76, %s78
    %p82 = scmp.eq.s32.totalorder %s21, 0
    %p83 = por %p81, %p82
    %p84 = scmp.ne.s32.totalorder %s76, %s78
    %p85 = scmp.eq.s32.totalorder %s26, 1
    %p86 = por %p84, %p85
    %p87 = scmp.ne.s32.totalorder %s78, %s79
    %p88 = scmp.eq.s32.totalorder %s26, 0
    %p89 = por %p87, %p88
    %p90 = scmp.ne.s32.totalorder %s78, %s79
    %p91 = scmp.eq.s32.totalorder %s27, 1
    %p92 = por %p90, %p91
    %p94 = scmp.ne.s32.totalorder %s79, %s93
    %p95 = scmp.eq.s32.totalorder %s27, 0
    %p96 = por %p94, %p95
    %s98 = sadd.s32 %s97, 1
    %p101 = scmp.eq.s32.totalorder %s21, 1
    %p102 = scmp.ne.s32.totalorder %s97, %s99
    %p103 = scmp.eq.s32.totalorder %s21, 0
    %p104 = por %p102, %p103
    %p105 = scmp.ne.s32.totalorder %s97, %s99
    %p106 = scmp.eq.s32.totalorder %s26, 1
    %p107 = por %p105, %p106
    %p108 = scmp.ne.s32.totalorder %s99, %s100
    %p109 = scmp.eq.s32.totalorder %s26, 0
    %p110 = por %p108, %p109
    %p111 = scmp.ne.s32.totalorder %s99, %s100
    %p112 = scmp.eq.s32.totalorder %s27, 1
    %p113 = por %p111, %p112
    %p115 = scmp.ne.s32.totalorder %s100, %s114
    %p116 = scmp.eq.s32.totalorder %s27, 0
    %p117 = por %p115, %p116
    %s119 = sadd.s32 %s118, 1
    %p122 = scmp.eq.s32.totalorder %s21, 1
    %p123 = scmp.ne.s32.totalorder %s118, %s120
    %p124 = scmp.eq.s32.totalorder %s21, 0
    %p125 = por %p123, %p124
    %p126 = scmp.ne.s32.totalorder %s118, %s120
    %p127 = scmp.eq.s32.totalorder %s26, 1
    %p128 = por %p126, %p127
    %p129 = scmp.ne.s32.totalorder %s120, %s121
    %p130 = scmp.eq.s32.totalorder %s26, 0
    %p131 = por %p129, %p130
    %p132 = scmp.ne.s32.totalorder %s120, %s121
    %p133 = scmp.eq.s32.totalorder %s27, 1
    %p134 = por %p132, %p133
    %p136 = scmp.ne.s32.totalorder %s121, %s135
    %p137 = scmp.eq.s32.totalorder %s27, 0
    %p138 = por %p136, %p137
    %s140 = sadd.s32 %s139, 1
    %p143 = scmp.eq.s32.totalorder %s21, 1
    %p144 = scmp.ne.s32.totalorder %s139, %s141
    %p145 = scmp.eq.s32.totalorder %s21, 0
    %p146 = por %p144, %p145
    %p147 = scmp.ne.s32.totalorder %s139, %s141
    %p148 = scmp.eq.s32.totalorder %s26, 1
    %p149 = por %p147, %p148
    %p150 = scmp.ne.s32.totalorder %s141, %s142
    %p151 = scmp.eq.s32.totalorder %s26, 0
    %p152 = por %p150, %p151
    %p153 = scmp.ne.s32.totalorder %s141, %s142
    %p154 = scmp.eq.s32.totalorder %s27, 1
    %p155 = por %p153, %p154
    %p157 = scmp.ne.s32.totalorder %s142, %s156
    %p158 = scmp.eq.s32.totalorder %s27, 0
    %p159 = por %p157, %p158
    %s161 = sadd.s32 %s160, 1
    %p164 = scmp.eq.s32.totalorder %s21, 1
    %p165 = scmp.ne.s32.totalorder %s160, %s162
    %p166 = scmp.eq.s32.totalorder %s21, 0
    %p167 = por %p165, %p166
    %p168 = scmp.ne.s32.totalorder %s160, %s162
    %p169 = scmp.eq.s32.totalorder %s26, 1
    %p170 = por %p168, %p169
    %p171 = scmp.ne.s32.totalorder %s162, %s163
    %p172 = scmp.eq.s32.totalorder %s26, 0
    %p173 = por %p171, %p172
    %p174 = scmp.ne.s32.totalorder %s162, %s163
    %p175 = scmp.eq.s32.totalorder %s27, 1
    %p176 = por %p174, %p175
    %p178 = scmp.ne.s32.totalorder %s163, %s177
    %p179 = scmp.eq.s32.totalorder %s27, 0
    %p180 = por %p178, %p179
    %s182 = sadd.s32 %s181, 1
    %p185 = scmp.eq.s32.totalorder %s21, 1
    %p186 = scmp.ne.s32.totalorder %s181, %s183
    %p187 = scmp.eq.s32.totalorder %s21, 0
    %p188 = por %p186, %p187
    %p189 = scmp.ne.s32.totalorder %s181, %s183
    %p190 = scmp.eq.s32.totalorder %s26, 1
    %p191 = por %p189, %p190
    %p192 = scmp.ne.s32.totalorder %s183, %s184
    %p193 = scmp.eq.s32.totalorder %s26, 0
    %p194 = por %p192, %p193
    %p195 = scmp.ne.s32.totalorder %s183, %s184
    %p196 = scmp.eq.s32.totalorder %s27, 1
    %p197 = por %p195, %p196
    %p199 = scmp.ne.s32.totalorder %s184, %s198
    %p200 = scmp.eq.s32.totalorder %s27, 0
    %p201 = por %p199, %p200
    %s203 = sadd.s32 %s202, 1
    %p206 = scmp.eq.s32.totalorder %s21, 1
    %p207 = scmp.ne.s32.totalorder %s202, %s204
    %p208 = scmp.eq.s32.totalorder %s21, 0
    %p209 = por %p207, %p208
    %p210 = scmp.ne.s32.totalorder %s202, %s204
    %p211 = scmp.eq.s32.totalorder %s26, 1
    %p212 = por %p210, %p211
    %p213 = scmp.ne.s32.totalorder %s204, %s205
    %p214 = scmp.eq.s32.totalorder %s26, 0
    %p215 = por %p213, %p214
    %p216 = scmp.ne.s32.totalorder %s204, %s205
    %p217 = scmp.eq.s32.totalorder %s27, 1
    %p218 = por %p216, %p217
    %p220 = scmp.ne.s32.totalorder %s205, %s219
    %p221 = scmp.eq.s32.totalorder %s27, 0
    %p222 = por %p220, %p221
    %s224 = sadd.s32 %s223, 1
    %p227 = scmp.eq.s32.totalorder %s21, 1
    %p228 = scmp.ne.s32.totalorder %s223, %s225
    %p229 = scmp.eq.s32.totalorder %s21, 0
    %p230 = por %p228, %p229
    %p231 = scmp.ne.s32.totalorder %s223, %s225
    %p232 = scmp.eq.s32.totalorder %s26, 1
    %p233 = por %p231, %p232
    %p234 = scmp.ne.s32.totalorder %s225, %s226
    %p235 = scmp.eq.s32.totalorder %s26, 0
    %p236 = por %p234, %p235
    %p237 = scmp.ne.s32.totalorder %s225, %s226
    %p238 = scmp.eq.s32.totalorder %s27, 1
    %p239 = por %p237, %p238
    %p241 = scmp.ne.s32.totalorder %s226, %s240
    %p242 = scmp.eq.s32.totalorder %s27, 0
    %p243 = por %p241, %p242
    %s245 = sadd.s32 %s244, 1
    %p248 = scmp.eq.s32.totalorder %s21, 1
    %p249 = scmp.ne.s32.totalorder %s244, %s246
    %p250 = scmp.eq.s32.totalorder %s21, 0
    %p251 = por %p249, %p250
    %p252 = scmp.ne.s32.totalorder %s244, %s246
    %p253 = scmp.eq.s32.totalorder %s26, 1
    %p254 = por %p252, %p253
    %p255 = scmp.ne.s32.totalorder %s246, %s247
    %p256 = scmp.eq.s32.totalorder %s26, 0
    %p257 = por %p255, %p256
    %p258 = scmp.ne.s32.totalorder %s246, %s247
    %p259 = scmp.eq.s32.totalorder %s27, 1
    %p260 = por %p258, %p259
    %p262 = scmp.ne.s32.totalorder %s247, %s261
    %p263 = scmp.eq.s32.totalorder %s27, 0
    %p264 = por %p262, %p263
    %s266 = sadd.s32 %s265, 1
    %p269 = scmp.eq.s32.totalorder %s21, 1
    %p270 = scmp.ne.s32.totalorder %s265, %s267
    %p271 = scmp.eq.s32.totalorder %s21, 0
    %p272 = por %p270, %p271
    %p273 = scmp.ne.s32.totalorder %s265, %s267
    %p274 = scmp.eq.s32.totalorder %s26, 1
    %p275 = por %p273, %p274
    %p276 = scmp.ne.s32.totalorder %s267, %s268
    %p277 = scmp.eq.s32.totalorder %s26, 0
    %p278 = por %p276, %p277
    %p279 = scmp.ne.s32.totalorder %s267, %s268
    %p280 = scmp.eq.s32.totalorder %s27, 1
    %p281 = por %p279, %p280
    %p283 = scmp.ne.s32.totalorder %s268, %s282
    %p284 = scmp.eq.s32.totalorder %s27, 0
    %p285 = por %p283, %p284
    %s287 = sadd.s32 %s286, 1
    %p290 = scmp.eq.s32.totalorder %s21, 1
    %p291 = scmp.ne.s32.totalorder %s286, %s288
    %p292 = scmp.eq.s32.totalorder %s21, 0
    %p293 = por %p291, %p292
    %p294 = scmp.ne.s32.totalorder %s286, %s288
    %p295 = scmp.eq.s32.totalorder %s26, 1
    %p296 = por %p294, %p295
    %p297 = scmp.ne.s32.totalorder %s288, %s289
    %p298 = scmp.eq.s32.totalorder %s26, 0
    %p299 = por %p297, %p298
    %p300 = scmp.ne.s32.totalorder %s288, %s289
    %p301 = scmp.eq.s32.totalorder %s27, 1
    %p302 = por %p300, %p301
    %p304 = scmp.ne.s32.totalorder %s289, %s303
    %p305 = scmp.eq.s32.totalorder %s27, 0
    %p306 = por %p304, %p305
    %s307 = ssub.s32 %s21, %s28
    %p308 = scmp.eq.s32.totalorder %s307, 0
    %s310 = sadd.s32 %s309, 1
    %s311 = scalar_select %p308, %s309, %s310
    %p314 = pneg %p308
    %p315 = scmp.eq.s32.totalorder %s21, 1
    %p316 = por %p314, %p315
    %p317 = scmp.ne.s32.totalorder %s309, %s312
    %p318 = scmp.eq.s32.totalorder %s21, 0
    %p319 = por %p317, %p318
    %p320 = scmp.ne.s32.totalorder %s309, %s312
    %p321 = scmp.eq.s32.totalorder %s26, 1
    %p322 = por %p320, %p321
    %p323 = scmp.ne.s32.totalorder %s312, %s313
    %p324 = scmp.eq.s32.totalorder %s26, 0
    %p325 = por %p323, %p324
    %p326 = scmp.ne.s32.totalorder %s312, %s313
    %p327 = scmp.eq.s32.totalorder %s27, 1
    %p328 = por %p326, %p327
    %p330 = scmp.ne.s32.totalorder %s313, %s329
    %p331 = scmp.eq.s32.totalorder %s27, 0
    %p332 = por %p330, %p331
    %p333 = scmp.le.s32.totalorder 1, %s21
    %p334 = scmp.lt.s32.totalorder %s21, 3
    %p335 = pnand %p333, %p334
    %p336 = pneg %p335
    // Predicated region
    $region9: #{custom_model_forward.1} parent=5 // pred_check
      _
    $region10: #{custom_model_forward.1} parent=5 // pred_check_branch
      %338 = sbr.rel (%p335) target = $region12
    $region11: #{custom_model_forward.1} parent=5 // pred_region
      %s339 = ssub.s32 %s21, 1
      // Predicated region
      $region13: #{custom_model_forward.1} parent=11 // pred_check
        %p340 = pneg %p68
      $region14: #{custom_model_forward.1} parent=11 // pred_check_branch
        %342 = sbr.rel (%p340) target = $region16
      $region15: #{custom_model_forward.1} parent=11 // pred_region
        _
      $region16: #{custom_model_forward.1} parent=11 // pred_fallthru
        _
      // Predicated region
      $region17: #{custom_model_forward.1} parent=11 // pred_check
        %p343 = pneg %p89
      $region18: #{custom_model_forward.1} parent=11 // pred_check_branch
        %345 = sbr.rel (%p343) target = $region20
      $region19: #{custom_model_forward.1} parent=11 // pred_region
        _
      $region20: #{custom_model_forward.1} parent=11 // pred_fallthru
        _
      // Predicated region
      $region21: #{custom_model_forward.1} parent=11 // pred_check
        %p346 = pneg %p110
      $region22: #{custom_model_forward.1} parent=11 // pred_check_branch
        %348 = sbr.rel (%p346) target = $region24
      $region23: #{custom_model_forward.1} parent=11 // pred_region
        _
      $region24: #{custom_model_forward.1} parent=11 // pred_fallthru
        _
      // Predicated region
      $region25: #{custom_model_forward.1} parent=11 // pred_check
        %p349 = pneg %p131
      $region26: #{custom_model_forward.1} parent=11 // pred_check_branch
        %351 = sbr.rel (%p349) target = $region28
      $region27: #{custom_model_forward.1} parent=11 // pred_region
        _
      $region28: #{custom_model_forward.1} parent=11 // pred_fallthru
        _
      // Predicated region
      $region29: #{custom_model_forward.1} parent=11 // pred_check
        %p352 = pneg %p152
      $region30: #{custom_model_forward.1} parent=11 // pred_check_branch
        %354 = sbr.rel (%p352) target = $region32
      $region31: #{custom_model_forward.1} parent=11 // pred_region
        _
      $region32: #{custom_model_forward.1} parent=11 // pred_fallthru
        _
      // Predicated region
      $region33: #{custom_model_forward.1} parent=11 // pred_check
        %p355 = pneg %p173
      $region34: #{custom_model_forward.1} parent=11 // pred_check_branch
        %357 = sbr.rel (%p355) target = $region36
      $region35: #{custom_model_forward.1} parent=11 // pred_region
        _
      $region36: #{custom_model_forward.1} parent=11 // pred_fallthru
        _
      // Predicated region
      $region37: #{custom_model_forward.1} parent=11 // pred_check
        %p358 = pneg %p194
      $region38: #{custom_model_forward.1} parent=11 // pred_check_branch
        %360 = sbr.rel (%p358) target = $region40
      $region39: #{custom_model_forward.1} parent=11 // pred_region
        _
      $region40: #{custom_model_forward.1} parent=11 // pred_fallthru
        _
      // Predicated region
      $region41: #{custom_model_forward.1} parent=11 // pred_check
        %p361 = pneg %p215
      $region42: #{custom_model_forward.1} parent=11 // pred_check_branch
        %363 = sbr.rel (%p361) target = $region44
      $region43: #{custom_model_forward.1} parent=11 // pred_region
        _
      $region44: #{custom_model_forward.1} parent=11 // pred_fallthru
        _
      // Predicated region
      $region45: #{custom_model_forward.1} parent=11 // pred_check
        %p364 = pneg %p236
      $region46: #{custom_model_forward.1} parent=11 // pred_check_branch
        %366 = sbr.rel (%p364) target = $region48
      $region47: #{custom_model_forward.1} parent=11 // pred_region
        _
      $region48: #{custom_model_forward.1} parent=11 // pred_fallthru
        _
      // Predicated region
      $region49: #{custom_model_forward.1} parent=11 // pred_check
        %p367 = pneg %p257
      $region50: #{custom_model_forward.1} parent=11 // pred_check_branch
        %369 = sbr.rel (%p367) target = $region52
      $region51: #{custom_model_forward.1} parent=11 // pred_region
        _
      $region52: #{custom_model_forward.1} parent=11 // pred_fallthru
        _
      // Predicated region
      $region53: #{custom_model_forward.1} parent=11 // pred_check
        %p370 = pneg %p278
      $region54: #{custom_model_forward.1} parent=11 // pred_check_branch
        %372 = sbr.rel (%p370) target = $region56
      $region55: #{custom_model_forward.1} parent=11 // pred_region
        _
      $region56: #{custom_model_forward.1} parent=11 // pred_fallthru
        _
      // Predicated region
      $region57: #{custom_model_forward.1} parent=11 // pred_check
        %p373 = pneg %p299
      $region58: #{custom_model_forward.1} parent=11 // pred_check_branch
        %375 = sbr.rel (%p373) target = $region60
      $region59: #{custom_model_forward.1} parent=11 // pred_region
        _
      $region60: #{custom_model_forward.1} parent=11 // pred_fallthru
        _
    $region12: #{custom_model_forward.1} parent=5 // pred_fallthru
      _
    %p376 = scmp.lt.s32.totalorder %s21, 2
    // Predicated region
    $region61: #{custom_model_forward.1} parent=5 // pred_check
      %p377 = pneg %p376
    $region62: #{custom_model_forward.1} parent=5 // pred_check_branch
      %379 = sbr.rel (%p377) target = $region64
    $region63: #{custom_model_forward.1} parent=5 // pred_region
      // Predicated region
      $region65: #{custom_model_forward.1} parent=63 // pred_check
        %p380 = pneg %p41
      $region66: #{custom_model_forward.1} parent=63 // pred_check_branch
        %382 = sbr.rel (%p380) target = $region68
      $region67: #{custom_model_forward.1} parent=63 // pred_region
        %s383 = smul.u32 32, %s21
        %s384 = ssub.s32 38, %s383
        %p385 = scmp.lt.s32.totalorder %s384, 32
        %s386 = scalar_select %p385, %s384, 32
        %s387 = smul.u32 128, %s386
        %p388 = scmp.lt.s32.totalorder %s383, 37
        %s389 = scalar_select %p388, %s383, 37
        %s390 = smul.addr %s389, 8
        %s391 = scalar_lea.vmem %s0, %s390
        %s392 = smul.u32 32, %s21
        %s393 = ssub.s32 38, %s392
        %p394 = scmp.lt.s32.totalorder %s393, 32
        %s395 = scalar_select %p394, %s393, 32
        %s396 = smul.u32 128, %s395
      $region68: #{custom_model_forward.1} parent=63 // pred_fallthru
        _
    $region64: #{custom_model_forward.1} parent=5 // pred_fallthru
      _
    %p397 = scmp.le.s32.totalorder 1, %s21
    %p398 = scmp.lt.s32.totalorder %s21, 3
    %p399 = pnand %p397, %p398
    %p400 = pneg %p399
    // Predicated region
    $region69: #{custom_model_forward.1} parent=5 // pred_check
      _
    $region70: #{custom_model_forward.1} parent=5 // pred_check_branch
      %402 = sbr.rel (%p399) target = $region72
    $region71: #{custom_model_forward.1} parent=5 // pred_region
      %s403 = ssub.s32 %s21, 1
      %s404 = smul.u32 32, %s26
      %s405 = ssub.s32 38, %s404
      %p406 = scmp.lt.s32.totalorder %s405, 32
      %s407 = scalar_select %p406, %s405, 32
      %s408 = smul.u32 128, %s407
      %p409 = scmp.lt.s32.totalorder %s404, 37
      %s410 = scalar_select %p409, %s404, 37
      %s411 = smul.addr %s410, 8
      %s412 = scalar_lea.vmem %s0, %s411
      %p413 = pneg %p47
      %p414 = pneg %p44
      %p415 = pneg %p68
      %p416 = pneg %p65
      %p417 = pneg %p89
      %p418 = pneg %p86
      %p419 = pneg %p110
      %p420 = pneg %p107
      %p421 = pneg %p131
      %p422 = pneg %p128
      %p423 = pneg %p152
      %p424 = pneg %p149
      %p425 = pneg %p173
      %p426 = pneg %p170
      %p427 = pneg %p194
      %p428 = pneg %p191
      %p429 = pneg %p215
      %p430 = pneg %p212
      %p431 = pneg %p236
      %p432 = pneg %p233
      %p433 = pneg %p257
      %p434 = pneg %p254
      %p435 = pneg %p278
      %p436 = pneg %p275
      %p437 = pneg %p299
      %p438 = pneg %p296
      %p439 = pneg %p325
      %p440 = pneg %p322
      %s441 = smul.u32 2, %s26
      %p442 = scmp.lt.s32.totalorder %s441, 3
      %s443 = scalar_select %p442, %s441, 3
      %s444 = scalar_lea.vmem %s13, %s443
      %s445 = smul.u32 32, %s26
      %s446 = ssub.s32 38, %s445
      %p447 = scmp.lt.s32.totalorder %s446, 32
      %s448 = scalar_select %p447, %s446, 32
      %s449 = smul.u32 128, %s448
      %p450 = scmp.lt.s32.totalorder %s445, 37
      %s451 = scalar_select %p450, %s445, 37
      %s452 = smul.addr %s451, 8
      %s453 = scalar_lea.vmem %s0, %s452
      %s454 = smul.u32 32, %s26
      %s455 = ssub.s32 38, %s454
      %p456 = scmp.lt.s32.totalorder %s455, 32
      %s457 = scalar_select %p456, %s455, 32
      %s458 = smul.u32 128, %s457
      %s459 = smul.u32 2, %s26
      %p460 = scmp.lt.s32.totalorder %s459, 3
      %s461 = scalar_select %p460, %s459, 3
      %s462 = scalar_lea.vmem %s13, %s461
      %s463 = smul.u32 2, %s26
      %v465 = vld [vmem:[%s453] sm:$0xff]
      %v466 = vld [vmem:[%s453 + $0x8] sm:$0xff]
      %v467 = vld [vmem:[%s453 + $0x10] sm:$0xff]
      %v468 = vld [vmem:[%s453 + $0x18] sm:$0xff]
      %v469 = vld [vmem:[%s453 + $0x20] sm:$0xff]
      %v470 = vld [vmem:[%s453 + $0x28] sm:$0xff]
      %v471 = vld [vmem:[%s453 + $0x30] sm:$0xff]
      %v472 = vld [vmem:[%s453 + $0x38] sm:$0xff]
      %v473 = vld [vmem:[%s453 + $0x40] sm:$0xff]
      %v474 = vld [vmem:[%s453 + $0x48] sm:$0xff]
      %v475 = vld [vmem:[%s453 + $0x50] sm:$0xff]
      %v476 = vld [vmem:[%s453 + $0x58] sm:$0xff]
      %v477 = vld [vmem:[%s453 + $0x60] sm:$0xff]
      %v478 = vld [vmem:[%s453 + $0x68] sm:$0xff]
      %v479 = vld [vmem:[%s453 + $0x70] sm:$0xff]
      %v480 = vld [vmem:[%s453 + $0x78] sm:$0xff]
      %v481 = vld [vmem:[%s453 + $0x80] sm:$0xff]
      %v482 = vld [vmem:[%s453 + $0x88] sm:$0xff]
      %v483 = vld [vmem:[%s453 + $0x90] sm:$0xff]
      %v484 = vld [vmem:[%s453 + $0x98] sm:$0xff]
      %v485 = vld [vmem:[%s453 + $0xa0] sm:$0xff]
      %v486 = vld [vmem:[%s453 + $0xa8] sm:$0xff]
      %v487 = vld [vmem:[%s453 + $0xb0] sm:$0xff]
      %v488 = vld [vmem:[%s453 + $0xb8] sm:$0xff]
      %v489 = vld [vmem:[%s453 + $0xc0] sm:$0xff]
      %v490 = vld [vmem:[%s453 + $0xc8] sm:$0xff]
      %v491 = vld [vmem:[%s453 + $0xd0] sm:$0xff]
      %v492 = vld [vmem:[%s453 + $0xd8] sm:$0xff]
      %v493 = vld [vmem:[%s453 + $0xe0] sm:$0xff]
      %v494 = vld [vmem:[%s453 + $0xe8] sm:$0xff]
      %v495 = vld [vmem:[%s453 + $0xf0] sm:$0xff]
      %v496 = vld [vmem:[%s453 + $0xf8] sm:$0xff]
      %v497 = vpack.c.bf16 %v466, %v465
      %v498 = vpack.c.bf16 %v468, %v467
      %v499 = vpack.c.bf16 %v470, %v469
      %v500 = vpack.c.bf16 %v472, %v471
      %v501 = vpack.c.bf16 %v474, %v473
      %v502 = vpack.c.bf16 %v476, %v475
      %v503 = vpack.c.bf16 %v478, %v477
      %v504 = vpack.c.bf16 %v480, %v479
      %v505 = vpack.c.bf16 %v482, %v481
      %v506 = vpack.c.bf16 %v484, %v483
      %v507 = vpack.c.bf16 %v486, %v485
      %v508 = vpack.c.bf16 %v488, %v487
      %v509 = vpack.c.bf16 %v490, %v489
      %v510 = vpack.c.bf16 %v492, %v491
      %v511 = vpack.c.bf16 %v494, %v493
      %v512 = vpack.c.bf16 %v496, %v495
      %v513 = vld [vmem:[%s1] sm:$0xf]
      %v514 = vld [vmem:[%s1 + $0x4] sm:$0xf]
      %v515 = vld [vmem:[%s2] sm:$0xff]
      %v516 = vld [vmem:[%s2 + $0x8] sm:$0xff]
      %518 = vset.pattern.permute.xlu0 0
      %519 = vperm.xlu0 %518, %v515
      %v520 = vpop.permute.xlu0 %519
      %523 = vset.pattern.permute.xlu0 0
      %524 = vperm.xlu0 %523, %v516
      %v525 = vpop.permute.xlu0 %524
      %v529 = vunpack.c.l.b16 %v513
      %v530 = vunpack.c.l.b16 %v514
      %v531 = vpack.c.b16 %v530, %v529
      %vm532 = vcmask 64512
      %v534 = vsel %vm532, %v531, 0
      %v537 = vsel %vm532, %v497, 0
      %v540 = vsel %vm532, %v498, 0
      %v543 = vsel %vm532, %v499, 0
      %v546 = vsel %vm532, %v500, 0
      %v549 = vsel %vm532, %v501, 0
      %v552 = vsel %vm532, %v502, 0
      %v555 = vsel %vm532, %v503, 0
      %v558 = vsel %vm532, %v504, 0
      %v561 = vsel %vm532, %v505, 0
      %v564 = vsel %vm532, %v506, 0
      %v567 = vsel %vm532, %v507, 0
      %v570 = vsel %vm532, %v508, 0
      %v573 = vsel %vm532, %v509, 0
      %v576 = vsel %vm532, %v510, 0
      %v579 = vsel %vm532, %v511, 0
      %v582 = vsel %vm532, %v512, 0
      %584 = vmatprep.subr.bf16.mxu0 0
      %585 = vmatpush1.bf16.xpose.msra.mxu0 %v537
      %586 = vmatprep.subr.bf16.mxu0 0
      %587 = vmatpush1.bf16.xpose.msra.mxu0 %v540
      %588 = vmatprep.subr.bf16.mxu0 0
      %589 = vmatpush1.bf16.xpose.msra.mxu0 %v543
      %590 = vmatprep.subr.bf16.mxu0 0
      %591 = vmatpush1.bf16.xpose.msra.mxu0 %v546
      %592 = vmatprep.subr.bf16.mxu0 0
      %593 = vmatpush1.bf16.xpose.msra.mxu0 %v549
      %594 = vmatprep.subr.bf16.mxu0 0
      %595 = vmatpush1.bf16.xpose.msra.mxu0 %v552
      %596 = vmatprep.subr.bf16.mxu0 0
      %597 = vmatpush1.bf16.xpose.msra.mxu0 %v555
      %598 = vmatprep.subr.bf16.mxu0 0
      %599 = vmatpush1.bf16.xpose.msra.mxu0 %v558
      %600 = vmatprep.subr.bf16.mxu0 0
      %601 = vmatpush1.bf16.xpose.msra.mxu0 %v561
      %602 = vmatprep.subr.bf16.mxu0 0
      %603 = vmatpush1.bf16.xpose.msra.mxu0 %v564
      %604 = vmatprep.subr.bf16.mxu0 0
      %605 = vmatpush1.bf16.xpose.msra.mxu0 %v567
      %606 = vmatprep.subr.bf16.mxu0 0
      %607 = vmatpush1.bf16.xpose.msra.mxu0 %v570
      %608 = vmatprep.subr.bf16.mxu0 0
      %609 = vmatpush1.bf16.xpose.msra.mxu0 %v573
      %610 = vmatprep.subr.bf16.mxu0 0
      %611 = vmatpush1.bf16.xpose.msra.mxu0 %v576
      %612 = vmatprep.subr.bf16.mxu0 0
      %613 = vmatpush1.bf16.xpose.msra.mxu0 %v579
      %614 = vmatprep.subr.bf16.mxu0 0
      %615 = vmatpush1.bf16.xpose.msra.mxu0 %v582
      %616 = vmatprep.mubr.bf16.mxu0 0
      %617 = vmatmul.mubr.bf16.gmra.mrb[0].mxu0 %v534
      %v618 = vpop.f32.mrb[0].mxu0
      %v619 = vadd.f32 %v520, %v618
      %v620 = vpop.f32.mrb[0].mxu0
      %v621 = vadd.f32 %v520, %v620
      %v622 = vpop.f32.mrb[0].mxu0
      %v623 = vadd.f32 %v525, %v622
      %v624 = vpop.f32.mrb[0].mxu0
      %v625 = vadd.f32 %v525, %v624
      %626 = vdwg.mxu0
      %v627 = vmax.f32 %v619, 0.0
      %v628 = vmax.f32 %v621, 0.0
      %v629 = vmax.f32 %v623, 0.0
      %v630 = vmax.f32 %v625, 0.0
      %v631 = vpack.c.bf16 %v629, %v627
      %v632 = vpack.c.bf16 %v630, %v628
      %v633 = vld [vmem:[%s3] sm:$0xf]
      %v634 = vld [vmem:[%s3 + $0x4] sm:$0xf]
      %v635 = vld [vmem:[%s3 + $0x8] sm:$0xf]
      %v636 = vld [vmem:[%s3 + $0xc] sm:$0xf]
      %v637 = vld [vmem:[%s4] sm:$0xff]
      %v638 = vld [vmem:[%s4 + $0x8] sm:$0xff]
      %v639 = vld [vmem:[%s4 + $0x10] sm:$0xff]
      %v640 = vld [vmem:[%s4 + $0x18] sm:$0xff]
      %642 = vset.pattern.permute.xlu0 0
      %643 = vperm.xlu0 %642, %v637
      %v644 = vpop.permute.xlu0 %643
      %647 = vset.pattern.permute.xlu0 0
      %648 = vperm.xlu0 %647, %v638
      %v649 = vpop.permute.xlu0 %648
      %652 = vset.pattern.permute.xlu0 0
      %653 = vperm.xlu0 %652, %v639
      %v654 = vpop.permute.xlu0 %653
      %657 = vset.pattern.permute.xlu0 0
      %658 = vperm.xlu0 %657, %v640
      %v659 = vpop.permute.xlu0 %658
      %v665 = vunpack.c.l.b16 %v633
      %v666 = vunpack.c.l.b16 %v634
      %v667 = vunpack.c.l.b16 %v635
      %v668 = vunpack.c.l.b16 %v636
      %v669 = vpack.c.b16 %v666, %v665
      %v670 = vpack.c.b16 %v668, %v667
      %vm671 = vcmask 130048
      %v673 = vsel %vm671, %v669, 0
      %v676 = vsel %vm671, %v670, 0
      %678 = vmatprep.subr.bf16.mxu0 %v632
      %679 = vmatpush1.bf16.msra.mxu0 %v631
      %680 = vmatprep.subr.bf16.mxu0 0
      %681 = vmatpush1.bf16.msra.mxu0 0
      %682 = vmatprep.subr.bf16.mxu0 0
      %683 = vmatpush1.bf16.msra.mxu0 0
      %684 = vmatprep.subr.bf16.mxu0 0
      %685 = vmatpush1.bf16.msra.mxu0 0
      %686 = vmatprep.subr.bf16.mxu0 0
      %687 = vmatpush1.bf16.msra.mxu0 0
      %688 = vmatprep.subr.bf16.mxu0 0
      %689 = vmatpush1.bf16.msra.mxu0 0
      %690 = vmatprep.subr.bf16.mxu0 0
      %691 = vmatpush1.bf16.msra.mxu0 0
      %692 = vmatprep.subr.bf16.mxu0 0
      %693 = vmatpush1.bf16.msra.mxu0 0
      %694 = vmatprep.subr.bf16.mxu0 0
      %695 = vmatpush1.bf16.msra.mxu0 0
      %696 = vmatprep.subr.bf16.mxu0 0
      %697 = vmatpush1.bf16.msra.mxu0 0
      %698 = vmatprep.subr.bf16.mxu0 0
      %699 = vmatpush1.bf16.msra.mxu0 0
      %700 = vmatprep.subr.bf16.mxu0 0
      %701 = vmatpush1.bf16.msra.mxu0 0
      %702 = vmatprep.subr.bf16.mxu0 0
      %703 = vmatpush1.bf16.msra.mxu0 0
      %704 = vmatprep.subr.bf16.mxu0 0
      %705 = vmatpush1.bf16.msra.mxu0 0
      %706 = vmatprep.subr.bf16.mxu0 0
      %707 = vmatpush1.bf16.msra.mxu0 0
      %708 = vmatprep.subr.bf16.mxu0 0
      %709 = vmatpush1.bf16.msra.mxu0 0
      %710 = vmatprep.mubr.bf16.mxu0 0
      %711 = vmatmul.mubr.bf16.gmra.mrb[0].mxu0 %v673
      %v712 = vpop.f32.mrb[0].mxu0
      %v713 = vadd.f32 %v644, %v712
      %v714 = vpop.f32.mrb[0].mxu0
      %v715 = vadd.f32 %v644, %v714
      %v716 = vpop.f32.mrb[0].mxu0
      %v717 = vadd.f32 %v649, %v716
      %v718 = vpop.f32.mrb[0].mxu0
      %v719 = vadd.f32 %v649, %v718
      %720 = vmatprep.mubr.bf16.mxu0 0
      %721 = vmatmul.mubr.bf16.gmra.mrb[0].mxu0 %v676
      %v722 = vpop.f32.mrb[0].mxu0
      %v723 = vadd.f32 %v654, %v722
      %v724 = vpop.f32.mrb[0].mxu0
      %v725 = vadd.f32 %v654, %v724
      %v726 = vpop.f32.mrb[0].mxu0
      %v727 = vadd.f32 %v659, %v726
      %v728 = vpop.f32.mrb[0].mxu0
      %v729 = vadd.f32 %v659, %v728
      %730 = vdwg.mxu0
      %v731 = vmax.f32 %v713, 0.0
      %v732 = vmax.f32 %v715, 0.0
      %v733 = vmax.f32 %v717, 0.0
      %v734 = vmax.f32 %v719, 0.0
      %v735 = vmax.f32 %v723, 0.0
      %v736 = vmax.f32 %v725, 0.0
      %v737 = vmax.f32 %v727, 0.0
      %v738 = vmax.f32 %v729, 0.0
      %v739 = vpack.c.bf16 %v733, %v731
      %v740 = vpack.c.bf16 %v734, %v732
      %v741 = vpack.c.bf16 %v737, %v735
      %v742 = vpack.c.bf16 %v738, %v736
      %v743 = vld [vmem:[%s5] sm:$0xf]
      %v744 = vld [vmem:[%s5 + $0x4] sm:$0xf]
      %v745 = vld [vmem:[%s5 + $0x8] sm:$0xf]
      %v746 = vld [vmem:[%s5 + $0xc] sm:$0xf]
      %v747 = vld [vmem:[%s5 + $0x10] sm:$0xf]
      %v748 = vld [vmem:[%s5 + $0x14] sm:$0xf]
      %v749 = vld [vmem:[%s5 + $0x18] sm:$0xf]
      %v750 = vld [vmem:[%s5 + $0x1c] sm:$0xf]
      %v751 = vld [vmem:[%s6] sm:$0xff]
      %v752 = vld [vmem:[%s6 + $0x8] sm:$0xff]
      %v753 = vld [vmem:[%s6 + $0x10] sm:$0xff]
      %v754 = vld [vmem:[%s6 + $0x18] sm:$0xff]
      %v755 = vld [vmem:[%s6 + $0x20] sm:$0xff]
      %v756 = vld [vmem:[%s6 + $0x28] sm:$0xff]
      %v757 = vld [vmem:[%s6 + $0x30] sm:$0xff]
      %v758 = vld [vmem:[%s6 + $0x38] sm:$0xff]
      %760 = vset.pattern.permute.xlu0 0
      %761 = vperm.xlu0 %760, %v751
      %v762 = vpop.permute.xlu0 %761
      %765 = vset.pattern.permute.xlu0 0
      %766 = vperm.xlu0 %765, %v752
      %v767 = vpop.permute.xlu0 %766
      %770 = vset.pattern.permute.xlu0 0
      %771 = vperm.xlu0 %770, %v753
      %v772 = vpop.permute.xlu0 %771
      %775 = vset.pattern.permute.xlu0 0
      %776 = vperm.xlu0 %775, %v754
      %v777 = vpop.permute.xlu0 %776
      %780 = vset.pattern.permute.xlu0 0
      %781 = vperm.xlu0 %780, %v755
      %v782 = vpop.permute.xlu0 %781
      %785 = vset.pattern.permute.xlu0 0
      %786 = vperm.xlu0 %785, %v756
      %v787 = vpop.permute.xlu0 %786
      %790 = vset.pattern.permute.xlu0 0
      %791 = vperm.xlu0 %790, %v757
      %v792 = vpop.permute.xlu0 %791
      %795 = vset.pattern.permute.xlu0 0
      %796 = vperm.xlu0 %795, %v758
      %v797 = vpop.permute.xlu0 %796
      %v807 = vunpack.c.l.b16 %v743
      %v808 = vunpack.c.l.b16 %v744
      %v809 = vunpack.c.l.b16 %v745
      %v810 = vunpack.c.l.b16 %v746
      %v811 = vunpack.c.l.b16 %v747
      %v812 = vunpack.c.l.b16 %v748
      %v813 = vunpack.c.l.b16 %v749
      %v814 = vunpack.c.l.b16 %v750
      %v815 = vpack.c.b16 %v808, %v807
      %v816 = vpack.c.b16 %v810, %v809
      %v817 = vpack.c.b16 %v812, %v811
      %v818 = vpack.c.b16 %v814, %v813
      %vm819 = vcmask 261120
      %v821 = vsel %vm819, %v815, 0
      %v824 = vsel %vm819, %v816, 0
      %v827 = vsel %vm819, %v817, 0
      %v830 = vsel %vm819, %v818, 0
      %832 = vmatprep.subr.bf16.mxu0 %v740
      %833 = vmatpush1.bf16.msra.mxu0 %v739
      %834 = vmatprep.subr.bf16.mxu0 %v742
      %835 = vmatpush1.bf16.msra.mxu0 %v741
      %836 = vmatprep.subr.bf16.mxu0 0
      %837 = vmatpush1.bf16.msra.mxu0 0
      %838 = vmatprep.subr.bf16.mxu0 0
      %839 = vmatpush1.bf16.msra.mxu0 0
      %840 = vmatprep.subr.bf16.mxu0 0
      %841 = vmatpush1.bf16.msra.mxu0 0
      %842 = vmatprep.subr.bf16.mxu0 0
      %843 = vmatpush1.bf16.msra.mxu0 0
      %844 = vmatprep.subr.bf16.mxu0 0
      %845 = vmatpush1.bf16.msra.mxu0 0
      %846 = vmatprep.subr.bf16.mxu0 0
      %847 = vmatpush1.bf16.msra.mxu0 0
      %848 = vmatprep.subr.bf16.mxu0 0
      %849 = vmatpush1.bf16.msra.mxu0 0
      %850 = vmatprep.subr.bf16.mxu0 0
      %851 = vmatpush1.bf16.msra.mxu0 0
      %852 = vmatprep.subr.bf16.mxu0 0
      %853 = vmatpush1.bf16.msra.mxu0 0
      %854 = vmatprep.subr.bf16.mxu0 0
      %855 = vmatpush1.bf16.msra.mxu0 0
      %856 = vmatprep.subr.bf16.mxu0 0
      %857 = vmatpush1.bf16.msra.mxu0 0
      %858 = vmatprep.subr.bf16.mxu0 0
      %859 = vmatpush1.bf16.msra.mxu0 0
      %860 = vmatprep.subr.bf16.mxu0 0
      %861 = vmatpush1.bf16.msra.mxu0 0
      %862 = vmatprep.subr.bf16.mxu0 0
      %863 = vmatpush1.bf16.msra.mxu0 0
      %864 = vmatprep.mubr.bf16.mxu0 0
      %865 = vmatmul.mubr.bf16.gmra.mrb[0].mxu0 %v821
      %v866 = vpop.f32.mrb[0].mxu0
      %v867 = vadd.f32 %v762, %v866
      %v868 = vpop.f32.mrb[0].mxu0
      %v869 = vadd.f32 %v762, %v868
      %v870 = vpop.f32.mrb[0].mxu0
      %v871 = vadd.f32 %v767, %v870
      %v872 = vpop.f32.mrb[0].mxu0
      %v873 = vadd.f32 %v767, %v872
      %874 = vmatprep.mubr.bf16.mxu0 0
      %875 = vmatmul.mubr.bf16.gmra.mrb[0].mxu0 %v824
      %v876 = vpop.f32.mrb[0].mxu0
      %v877 = vadd.f32 %v772, %v876
      %v878 = vpop.f32.mrb[0].mxu0
      %v879 = vadd.f32 %v772, %v878
      %v880 = vpop.f32.mrb[0].mxu0
      %v881 = vadd.f32 %v777, %v880
      %v882 = vpop.f32.mrb[0].mxu0
      %v883 = vadd.f32 %v777, %v882
      %884 = vmatprep.mubr.bf16.mxu0 0
      %885 = vmatmul.mubr.bf16.gmra.mrb[0].mxu0 %v827
      %v886 = vpop.f32.mrb[0].mxu0
      %v887 = vadd.f32 %v782, %v886
      %v888 = vpop.f32.mrb[0].mxu0
      %v889 = vadd.f32 %v782, %v888
      %v890 = vpop.f32.mrb[0].mxu0
      %v891 = vadd.f32 %v787, %v890
      %v892 = vpop.f32.mrb[0].mxu0
      %v893 = vadd.f32 %v787, %v892
      %894 = vmatprep.mubr.bf16.mxu0 0
      %895 = vmatmul.mubr.bf16.gmra.mrb[0].mxu0 %v830
      %v896 = vpop.f32.mrb[0].mxu0
      %v897 = vadd.f32 %v792, %v896
      %v898 = vpop.f32.mrb[0].mxu0
      %v899 = vadd.f32 %v792, %v898
      %v900 = vpop.f32.mrb[0].mxu0
      %v901 = vadd.f32 %v797, %v900
      %v902 = vpop.f32.mrb[0].mxu0
      %v903 = vadd.f32 %v797, %v902
      %904 = vdwg.mxu0
      %v905 = vmax.f32 %v867, 0.0
      %v906 = vmax.f32 %v869, 0.0
      %v907 = vmax.f32 %v871, 0.0
      %v908 = vmax.f32 %v873, 0.0
      %v909 = vmax.f32 %v877, 0.0
      %v910 = vmax.f32 %v879, 0.0
      %v911 = vmax.f32 %v881, 0.0
      %v912 = vmax.f32 %v883, 0.0
      %v913 = vmax.f32 %v887, 0.0
      %v914 = vmax.f32 %v889, 0.0
      %v915 = vmax.f32 %v891, 0.0
      %v916 = vmax.f32 %v893, 0.0
      %v917 = vmax.f32 %v897, 0.0
      %v918 = vmax.f32 %v899, 0.0
      %v919 = vmax.f32 %v901, 0.0
      %v920 = vmax.f32 %v903, 0.0
      %v921 = vpack.c.bf16 %v907, %v905
      %v922 = vpack.c.bf16 %v908, %v906
      %v923 = vpack.c.bf16 %v911, %v909
      %v924 = vpack.c.bf16 %v912, %v910
      %v925 = vpack.c.bf16 %v915, %v913
      %v926 = vpack.c.bf16 %v916, %v914
      %v927 = vpack.c.bf16 %v919, %v917
      %v928 = vpack.c.bf16 %v920, %v918
      %v929 = vld [vmem:[%s7] sm:$0xf]
      %v930 = vld [vmem:[%s7 + $0x4] sm:$0xf]
      %v931 = vld [vmem:[%s7 + $0x8] sm:$0xf]
      %v932 = vld [vmem:[%s7 + $0xc] sm:$0xf]
      %v933 = vld [vmem:[%s7 + $0x10] sm:$0xf]
      %v934 = vld [vmem:[%s7 + $0x14] sm:$0xf]
      %v935 = vld [vmem:[%s7 + $0x18] sm:$0xf]
      %v936 = vld [vmem:[%s7 + $0x1c] sm:$0xf]
      %v937 = vld [vmem:[%s7 + $0x20] sm:$0xf]
      %v938 = vld [vmem:[%s7 + $0x24] sm:$0xf]
      %v939 = vld [vmem:[%s7 + $0x28] sm:$0xf]
      %v940 = vld [vmem:[%s7 + $0x2c] sm:$0xf]
      %v941 = vld [vmem:[%s7 + $0x30] sm:$0xf]
      %v942 = vld [vmem:[%s7 + $0x34] sm:$0xf]
      %v943 = vld [vmem:[%s7 + $0x38] sm:$0xf]
      %v944 = vld [vmem:[%s7 + $0x3c] sm:$0xf]
      %v945 = vld [vmem:[%s8] sm:$0xff]
      %v946 = vld [vmem:[%s8 + $0x8] sm:$0xff]
      %v947 = vld [vmem:[%s8 + $0x10] sm:$0xff]
      %v948 = vld [vmem:[%s8 + $0x18] sm:$0xff]
      %v949 = vld [vmem:[%s8 + $0x20] sm:$0xff]
      %v950 = vld [vmem:[%s8 + $0x28] sm:$0xff]
      %v951 = vld [vmem:[%s8 + $0x30] sm:$0xff]
      %v952 = vld [vmem:[%s8 + $0x38] sm:$0xff]
      %v953 = vld [vmem:[%s8 + $0x40] sm:$0xff]
      %v954 = vld [vmem:[%s8 + $0x48] sm:$0xff]
      %v955 = vld [vmem:[%s8 + $0x50] sm:$0xff]
      %v956 = vld [vmem:[%s8 + $0x58] sm:$0xff]
      %v957 = vld [vmem:[%s8 + $0x60] sm:$0xff]
      %v958 = vld [vmem:[%s8 + $0x68] sm:$0xff]
      %v959 = vld [vmem:[%s8 + $0x70] sm:$0xff]
      %v960 = vld [vmem:[%s8 + $0x78] sm:$0xff]
      %962 = vset.pattern.permute.xlu0 0
      %963 = vperm.xlu0 %962, %v945
      %v964 = vpop.permute.xlu0 %963
      %967 = vset.pattern.permute.xlu0 0
      %968 = vperm.xlu0 %967, %v946
      %v969 = vpop.permute.xlu0 %968
      %972 = vset.pattern.permute.xlu0 0
      %973 = vperm.xlu0 %972, %v947
      %v974 = vpop.permute.xlu0 %973
      %977 = vset.pattern.permute.xlu0 0
      %978 = vperm.xlu0 %977, %v948
      %v979 = vpop.permute.xlu0 %978
      %982 = vset.pattern.permute.xlu0 0
      %983 = vperm.xlu0 %982, %v949
      %v984 = vpop.permute.xlu0 %983
      %987 = vset.pattern.permute.xlu0 0
      %988 = vperm.xlu0 %987, %v950
      %v989 = vpop.permute.xlu0 %988
      %992 = vset.pattern.permute.xlu0 0
      %993 = vperm.xlu0 %992, %v951
      %v994 = vpop.permute.xlu0 %993
      %997 = vset.pattern.permute.xlu0 0
      %998 = vperm.xlu0 %997, %v952
      %v999 = vpop.permute.xlu0 %998
      %1002 = vset.pattern.permute.xlu0 0
      %1003 = vperm.xlu0 %1002, %v953
      %v1004 = vpop.permute.xlu0 %1003
      %1007 = vset.pattern.permute.xlu0 0
      %1008 = vperm.xlu0 %1007, %v954
      %v1009 = vpop.permute.xlu0 %1008
      %1012 = vset.pattern.permute.xlu0 0
      %1013 = vperm.xlu0 %1012, %v955
      %v1014 = vpop.permute.xlu0 %1013
      %1017 = vset.pattern.permute.xlu0 0
      %1018 = vperm.xlu0 %1017, %v956
      %v1019 = vpop.permute.xlu0 %1018
      %1022 = vset.pattern.permute.xlu0 0
      %1023 = vperm.xlu0 %1022, %v957
      %v1024 = vpop.permute.xlu0 %1023
      %1027 = vset.pattern.permute.xlu0 0
      %1028 = vperm.xlu0 %1027, %v958
      %v1029 = vpop.permute.xlu0 %1028
      %1032 = vset.pattern.permute.xlu0 0
      %1033 = vperm.xlu0 %1032, %v959
      %v1034 = vpop.permute.xlu0 %1033
      %1037 = vset.pattern.permute.xlu0 0
      %1038 = vperm.xlu0 %1037, %v960
      %v1039 = vpop.permute.xlu0 %1038
      %v1057 = vunpack.c.l.b16 %v929
      %v1058 = vunpack.c.l.b16 %v930
      %v1059 = vunpack.c.l.b16 %v931
      %v1060 = vunpack.c.l.b16 %v932
      %v1061 = vunpack.c.l.b16 %v933
      %v1062 = vunpack.c.l.b16 %v934
      %v1063 = vunpack.c.l.b16 %v935
      %v1064 = vunpack.c.l.b16 %v936
      %v1065 = vunpack.c.l.b16 %v937
      %v1066 = vunpack.c.l.b16 %v938
      %v1067 = vunpack.c.l.b16 %v939
      %v1068 = vunpack.c.l.b16 %v940
      %v1069 = vunpack.c.l.b16 %v941
      %v1070 = vunpack.c.l.b16 %v942
      %v1071 = vunpack.c.l.b16 %v943
      %v1072 = vunpack.c.l.b16 %v944
      %v1073 = vpack.c.b16 %v1058, %v1057
      %v1074 = vpack.c.b16 %v1060, %v1059
      %v1075 = vpack.c.b16 %v1062, %v1061
      %v1076 = vpack.c.b16 %v1064, %v1063
      %v1077 = vpack.c.b16 %v1066, %v1065
      %v1078 = vpack.c.b16 %v1068, %v1067
      %v1079 = vpack.c.b16 %v1070, %v1069
      %v1080 = vpack.c.b16 %v1072, %v1071
      %vm1081 = vcmask 523264
      %v1083 = vsel %vm1081, %v1073, 0
      %v1086 = vsel %vm1081, %v1074, 0
      %v1089 = vsel %vm1081, %v1075, 0
      %v1092 = vsel %vm1081, %v1076, 0
      %v1095 = vsel %vm1081, %v1077, 0
      %v1098 = vsel %vm1081, %v1078, 0
      %v1101 = vsel %vm1081, %v1079, 0
      %v1104 = vsel %vm1081, %v1080, 0
      %1106 = vmatprep.subr.bf16.mxu0 %v922
      %1107 = vmatpush1.bf16.msra.mxu0 %v921
      %1108 = vmatprep.subr.bf16.mxu0 %v924
      %1109 = vmatpush1.bf16.msra.mxu0 %v923
      %1110 = vmatprep.subr.bf16.mxu0 %v926
      %1111 = vmatpush1.bf16.msra.mxu0 %v925
      %1112 = vmatprep.subr.bf16.mxu0 %v928
      %1113 = vmatpush1.bf16.msra.mxu0 %v927
      %1114 = vmatprep.subr.bf16.mxu0 0
      %1115 = vmatpush1.bf16.msra.mxu0 0
      %1116 = vmatprep.subr.bf16.mxu0 0
      %1117 = vmatpush1.bf16.msra.mxu0 0
      %1118 = vmatprep.subr.bf16.mxu0 0
      %1119 = vmatpush1.bf16.msra.mxu0 0
      %1120 = vmatprep.subr.bf16.mxu0 0
      %1121 = vmatpush1.bf16.msra.mxu0 0
      %1122 = vmatprep.subr.bf16.mxu0 0
      %1123 = vmatpush1.bf16.msra.mxu0 0
      %1124 = vmatprep.subr.bf16.mxu0 0
      %1125 = vmatpush1.bf16.msra.mxu0 0
      %1126 = vmatprep.subr.bf16.mxu0 0
      %1127 = vmatpush1.bf16.msra.mxu0 0
      %1128 = vmatprep.subr.bf16.mxu0 0
      %1129 = vmatpush1.bf16.msra.mxu0 0
      %1130 = vmatprep.subr.bf16.mxu0 0
      %1131 = vmatpush1.bf16.msra.mxu0 0
      %1132 = vmatprep.subr.bf16.mxu0 0
      %1133 = vmatpush1.bf16.msra.mxu0 0
      %1134 = vmatprep.subr.bf16.mxu0 0
      %1135 = vmatpush1.bf16.msra.mxu0 0
      %1136 = vmatprep.subr.bf16.mxu0 0
      %1137 = vmatpush1.bf16.msra.mxu0 0
      %1138 = vmatprep.mubr.bf16.mxu0 0
      %1139 = vmatmul.mubr.bf16.gmra.mrb[0].mxu0 %v1083
      %v1140 = vpop.f32.mrb[0].mxu0
      %v1141 = vadd.f32 %v964, %v1140
      %v1142 = vpop.f32.mrb[0].mxu0
      %v1143 = vadd.f32 %v964, %v1142
      %v1144 = vpop.f32.mrb[0].mxu0
      %v1145 = vadd.f32 %v969, %v1144
      %v1146 = vpop.f32.mrb[0].mxu0
      %v1147 = vadd.f32 %v969, %v1146
      %1148 = vmatprep.mubr.bf16.mxu0 0
      %1149 = vmatmul.mubr.bf16.gmra.mrb[0].mxu0 %v1086
      %v1150 = vpop.f32.mrb[0].mxu0
      %v1151 = vadd.f32 %v974, %v1150
      %v1152 = vpop.f32.mrb[0].mxu0
      %v1153 = vadd.f32 %v974, %v1152
      %v1154 = vpop.f32.mrb[0].mxu0
      %v1155 = vadd.f32 %v979, %v1154
      %v1156 = vpop.f32.mrb[0].mxu0
      %v1157 = vadd.f32 %v979, %v1156
      %1158 = vmatprep.mubr.bf16.mxu0 0
      %1159 = vmatmul.mubr.bf16.gmra.mrb[0].mxu0 %v1089
      %v1160 = vpop.f32.mrb[0].mxu0
      %v1161 = vadd.f32 %v984, %v1160
      %v1162 = vpop.f32.mrb[0].mxu0
      %v1163 = vadd.f32 %v984, %v1162
      %v1164 = vpop.f32.mrb[0].mxu0
      %v1165 = vadd.f32 %v989, %v1164
      %v1166 = vpop.f32.mrb[0].mxu0
      %v1167 = vadd.f32 %v989, %v1166
      %1168 = vmatprep.mubr.bf16.mxu0 0
      %1169 = vmatmul.mubr.bf16.gmra.mrb[0].mxu0 %v1092
      %v1170 = vpop.f32.mrb[0].mxu0
      %v1171 = vadd.f32 %v994, %v1170
      %v1172 = vpop.f32.mrb[0].mxu0
      %v1173 = vadd.f32 %v994, %v1172
      %v1174 = vpop.f32.mrb[0].mxu0
      %v1175 = vadd.f32 %v999, %v1174
      %v1176 = vpop.f32.mrb[0].mxu0
      %v1177 = vadd.f32 %v999, %v1176
      %1178 = vmatprep.mubr.bf16.mxu0 0
      %1179 = vmatmul.mubr.bf16.gmra.mrb[0].mxu0 %v1095
      %v1180 = vpop.f32.mrb[0].mxu0
      %v1181 = vadd.f32 %v1004, %v1180
      %v1182 = vpop.f32.mrb[0].mxu0
      %v1183 = vadd.f32 %v1004, %v1182
      %v1184 = vpop.f32.mrb[0].mxu0
      %v1185 = vadd.f32 %v1009, %v1184
      %v1186 = vpop.f32.mrb[0].mxu0
      %v1187 = vadd.f32 %v1009, %v1186
      %1188 = vmatprep.mubr.bf16.mxu0 0
      %1189 = vmatmul.mubr.bf16.gmra.mrb[0].mxu0 %v1098
      %v1190 = vpop.f32.mrb[0].mxu0
      %v1191 = vadd.f32 %v1014, %v1190
      %v1192 = vpop.f32.mrb[0].mxu0
      %v1193 = vadd.f32 %v1014, %v1192
      %v1194 = vpop.f32.mrb[0].mxu0
      %v1195 = vadd.f32 %v1019, %v1194
      %v1196 = vpop.f32.mrb[0].mxu0
      %v1197 = vadd.f32 %v1019, %v1196
      %1198 = vmatprep.mubr.bf16.mxu0 0
      %1199 = vmatmul.mubr.bf16.gmra.mrb[0].mxu0 %v1101
      %v1200 = vpop.f32.mrb[0].mxu0
      %v1201 = vadd.f32 %v1024, %v1200
      %v1202 = vpop.f32.mrb[0].mxu0
      %v1203 = vadd.f32 %v1024, %v1202
      %v1204 = vpop.f32.mrb[0].mxu0
      %v1205 = vadd.f32 %v1029, %v1204
      %v1206 = vpop.f32.mrb[0].mxu0
      %v1207 = vadd.f32 %v1029, %v1206
      %1208 = vmatprep.mubr.bf16.mxu0 0
      %1209 = vmatmul.mubr.bf16.gmra.mrb[0].mxu0 %v1104
      %v1210 = vpop.f32.mrb[0].mxu0
      %v1211 = vadd.f32 %v1034, %v1210
      %v1212 = vpop.f32.mrb[0].mxu0
      %v1213 = vadd.f32 %v1034, %v1212
      %v1214 = vpop.f32.mrb[0].mxu0
      %v1215 = vadd.f32 %v1039, %v1214
      %v1216 = vpop.f32.mrb[0].mxu0
      %v1217 = vadd.f32 %v1039, %v1216
      %1218 = vdwg.mxu0
      %v1219 = vmax.f32 %v1141, 0.0
      %v1220 = vmax.f32 %v1143, 0.0
      %v1221 = vmax.f32 %v1145, 0.0
      %v1222 = vmax.f32 %v1147, 0.0
      %v1223 = vmax.f32 %v1151, 0.0
      %v1224 = vmax.f32 %v1153, 0.0
      %v1225 = vmax.f32 %v1155, 0.0
      %v1226 = vmax.f32 %v1157, 0.0
      %v1227 = vmax.f32 %v1161, 0.0
      %v1228 = vmax.f32 %v1163, 0.0
      %v1229 = vmax.f32 %v1165, 0.0
      %v1230 = vmax.f32 %v1167, 0.0
      %v1231 = vmax.f32 %v1171, 0.0
      %v1232 = vmax.f32 %v1173, 0.0
      %v1233 = vmax.f32 %v1175, 0.0
      %v1234 = vmax.f32 %v1177, 0.0
      %v1235 = vmax.f32 %v1181, 0.0
      %v1236 = vmax.f32 %v1183, 0.0
      %v1237 = vmax.f32 %v1185, 0.0
      %v1238 = vmax.f32 %v1187, 0.0
      %v1239 = vmax.f32 %v1191, 0.0
      %v1240 = vmax.f32 %v1193, 0.0
      %v1241 = vmax.f32 %v1195, 0.0
      %v1242 = vmax.f32 %v1197, 0.0
      %v1243 = vmax.f32 %v1201, 0.0
      %v1244 = vmax.f32 %v1203, 0.0
      %v1245 = vmax.f32 %v1205, 0.0
      %v1246 = vmax.f32 %v1207, 0.0
      %v1247 = vmax.f32 %v1211, 0.0
      %v1248 = vmax.f32 %v1213, 0.0
      %v1249 = vmax.f32 %v1215, 0.0
      %v1250 = vmax.f32 %v1217, 0.0
      %v1251 = vpack.c.bf16 %v1221, %v1219
      %v1252 = vpack.c.bf16 %v1222, %v1220
      %v1253 = vpack.c.bf16 %v1225, %v1223
      %v1254 = vpack.c.bf16 %v1226, %v1224
      %v1255 = vpack.c.bf16 %v1229, %v1227
      %v1256 = vpack.c.bf16 %v1230, %v1228
      %v1257 = vpack.c.bf16 %v1233, %v1231
      %v1258 = vpack.c.bf16 %v1234, %v1232
      %v1259 = vpack.c.bf16 %v1237, %v1235
      %v1260 = vpack.c.bf16 %v1238, %v1236
      %v1261 = vpack.c.bf16 %v1241, %v1239
      %v1262 = vpack.c.bf16 %v1242, %v1240
      %v1263 = vpack.c.bf16 %v1245, %v1243
      %v1264 = vpack.c.bf16 %v1246, %v1244
      %v1265 = vpack.c.bf16 %v1249, %v1247
      %v1266 = vpack.c.bf16 %v1250, %v1248
      %v1267 = vld [vmem:[%s9] sm:$0xf]
      %v1268 = vld [vmem:[%s9 + $0x4] sm:$0xf]
      %v1269 = vld [vmem:[%s9 + $0x8] sm:$0xf]
      %v1270 = vld [vmem:[%s9 + $0xc] sm:$0xf]
      %v1271 = vld [vmem:[%s9 + $0x10] sm:$0xf]
      %v1272 = vld [vmem:[%s9 + $0x14] sm:$0xf]
      %v1273 = vld [vmem:[%s9 + $0x18] sm:$0xf]
      %v1274 = vld [vmem:[%s9 + $0x1c] sm:$0xf]
      %v1275 = vld [vmem:[%s9 + $0x20] sm:$0xf]
      %v1276 = vld [vmem:[%s9 + $0x24] sm:$0xf]
      %v1277 = vld [vmem:[%s9 + $0x28] sm:$0xf]
      %v1278 = vld [vmem:[%s9 + $0x2c] sm:$0xf]
      %v1279 = vld [vmem:[%s9 + $0x30] sm:$0xf]
      %v1280 = vld [vmem:[%s9 + $0x34] sm:$0xf]
      %v1281 = vld [vmem:[%s9 + $0x38] sm:$0xf]
      %v1282 = vld [vmem:[%s9 + $0x3c] sm:$0xf]
      %v1283 = vld [vmem:[%s9 + $0x40] sm:$0xf]
      %v1284 = vld [vmem:[%s9 + $0x44] sm:$0xf]
      %v1285 = vld [vmem:[%s9 + $0x48] sm:$0xf]
      %v1286 = vld [vmem:[%s9 + $0x4c] sm:$0xf]
      %v1287 = vld [vmem:[%s9 + $0x50] sm:$0xf]
      %v1288 = vld [vmem:[%s9 + $0x54] sm:$0xf]
      %v1289 = vld [vmem:[%s9 + $0x58] sm:$0xf]
      %v1290 = vld [vmem:[%s9 + $0x5c] sm:$0xf]
      %v1291 = vld [vmem:[%s9 + $0x60] sm:$0xf]
      %v1292 = vld [vmem:[%s9 + $0x64] sm:$0xf]
      %v1293 = vld [vmem:[%s9 + $0x68] sm:$0xf]
      %v1294 = vld [vmem:[%s9 + $0x6c] sm:$0xf]
      %v1295 = vld [vmem:[%s9 + $0x70] sm:$0xf]
      %v1296 = vld [vmem:[%s9 + $0x74] sm:$0xf]
      %v1297 = vld [vmem:[%s9 + $0x78] sm:$0xf]
      %v1298 = vld [vmem:[%s9 + $0x7c] sm:$0xf]
      %v1299 = vld [vmem:[%s10] sm:$0xff]
      %v1300 = vld [vmem:[%s10 + $0x8] sm:$0xff]
      %v1301 = vld [vmem:[%s10 + $0x10] sm:$0xff]
      %v1302 = vld [vmem:[%s10 + $0x18] sm:$0xff]
      %v1303 = vld [vmem:[%s10 + $0x20] sm:$0xff]
      %v1304 = vld [vmem:[%s10 + $0x28] sm:$0xff]
      %v1305 = vld [vmem:[%s10 + $0x30] sm:$0xff]
      %v1306 = vld [vmem:[%s10 + $0x38] sm:$0xff]
      %v1307 = vld [vmem:[%s10 + $0x40] sm:$0xff]
      %v1308 = vld [vmem:[%s10 + $0x48] sm:$0xff]
      %v1309 = vld [vmem:[%s10 + $0x50] sm:$0xff]
      %v1310 = vld [vmem:[%s10 + $0x58] sm:$0xff]
      %v1311 = vld [vmem:[%s10 + $0x60] sm:$0xff]
      %v1312 = vld [vmem:[%s10 + $0x68] sm:$0xff]
      %v1313 = vld [vmem:[%s10 + $0x70] sm:$0xff]
      %v1314 = vld [vmem:[%s10 + $0x78] sm:$0xff]
      %v1315 = vld [vmem:[%s10 + $0x80] sm:$0xff]
      %v1316 = vld [vmem:[%s10 + $0x88] sm:$0xff]
      %v1317 = vld [vmem:[%s10 + $0x90] sm:$0xff]
      %v1318 = vld [vmem:[%s10 + $0x98] sm:$0xff]
      %v1319 = vld [vmem:[%s10 + $0xa0] sm:$0xff]
      %v1320 = vld [vmem:[%s10 + $0xa8] sm:$0xff]
      %v1321 = vld [vmem:[%s10 + $0xb0] sm:$0xff]
      %v1322 = vld [vmem:[%s10 + $0xb8] sm:$0xff]
      %v1323 = vld [vmem:[%s10 + $0xc0] sm:$0xff]
      %v1324 = vld [vmem:[%s10 + $0xc8] sm:$0xff]
      %v1325 = vld [vmem:[%s10 + $0xd0] sm:$0xff]
      %v1326 = vld [vmem:[%s10 + $0xd8] sm:$0xff]
      %v1327 = vld [vmem:[%s10 + $0xe0] sm:$0xff]
      %v1328 = vld [vmem:[%s10 + $0xe8] sm:$0xff]
      %v1329 = vld [vmem:[%s10 + $0xf0] sm:$0xff]
      %v1330 = vld [vmem:[%s10 + $0xf8] sm:$0xff]
      %1332 = vset.pattern.permute.xlu0 0
      %1333 = vperm.xlu0 %1332, %v1299
      %v1334 = vpop.permute.xlu0 %1333
      %1337 = vset.pattern.permute.xlu0 0
      %1338 = vperm.xlu0 %1337, %v1300
      %v1339 = vpop.permute.xlu0 %1338
      %1342 = vset.pattern.permute.xlu0 0
      %1343 = vperm.xlu0 %1342, %v1301
      %v1344 = vpop.permute.xlu0 %1343
      %1347 = vset.pattern.permute.xlu0 0
      %1348 = vperm.xlu0 %1347, %v1302
      %v1349 = vpop.permute.xlu0 %1348
      %1352 = vset.pattern.permute.xlu0 0
      %1353 = vperm.xlu0 %1352, %v1303
      %v1354 = vpop.permute.xlu0 %1353
      %1357 = vset.pattern.permute.xlu0 0
      %1358 = vperm.xlu0 %1357, %v1304
      %v1359 = vpop.permute.xlu0 %1358
      %1362 = vset.pattern.permute.xlu0 0
      %1363 = vperm.xlu0 %1362, %v1305
      %v1364 = vpop.permute.xlu0 %1363
      %1367 = vset.pattern.permute.xlu0 0
      %1368 = vperm.xlu0 %1367, %v1306
      %v1369 = vpop.permute.xlu0 %1368
      %1372 = vset.pattern.permute.xlu0 0
      %1373 = vperm.xlu0 %1372, %v1307
      %v1374 = vpop.permute.xlu0 %1373
      %1377 = vset.pattern.permute.xlu0 0
      %1378 = vperm.xlu0 %1377, %v1308
      %v1379 = vpop.permute.xlu0 %1378
      %1382 = vset.pattern.permute.xlu0 0
      %1383 = vperm.xlu0 %1382, %v1309
      %v1384 = vpop.permute.xlu0 %1383
      %1387 = vset.pattern.permute.xlu0 0
      %1388 = vperm.xlu0 %1387, %v1310
      %v1389 = vpop.permute.xlu0 %1388
      %1392 = vset.pattern.permute.xlu0 0
      %1393 = vperm.xlu0 %1392, %v1311
      %v1394 = vpop.permute.xlu0 %1393
      %1397 = vset.pattern.permute.xlu0 0
      %1398 = vperm.xlu0 %1397, %v1312
      %v1399 = vpop.permute.xlu0 %1398
      %1402 = vset.pattern.permute.xlu0 0
      %1403 = vperm.xlu0 %1402, %v1313
      %v1404 = vpop.permute.xlu0 %1403
      %1407 = vset.pattern.permute.xlu0 0
      %1408 = vperm.xlu0 %1407, %v1314
      %v1409 = vpop.permute.xlu0 %1408
      %1412 = vset.pattern.permute.xlu0 0
      %1413 = vperm.xlu0 %1412, %v1315
      %v1414 = vpop.permute.xlu0 %1413
      %1417 = vset.pattern.permute.xlu0 0
      %1418 = vperm.xlu0 %1417, %v1316
      %v1419 = vpop.permute.xlu0 %1418
      %1422 = vset.pattern.permute.xlu0 0
      %1423 = vperm.xlu0 %1422, %v1317
      %v1424 = vpop.permute.xlu0 %1423
      %1427 = vset.pattern.permute.xlu0 0
      %1428 = vperm.xlu0 %1427, %v1318
      %v1429 = vpop.permute.xlu0 %1428
      %1432 = vset.pattern.permute.xlu0 0
      %1433 = vperm.xlu0 %1432, %v1319
      %v1434 = vpop.permute.xlu0 %1433
      %1437 = vset.pattern.permute.xlu0 0
      %1438 = vperm.xlu0 %1437, %v1320
      %v1439 = vpop.permute.xlu0 %1438
      %1442 = vset.pattern.permute.xlu0 0
      %1443 = vperm.xlu0 %1442, %v1321
      %v1444 = vpop.permute.xlu0 %1443
      %1447 = vset.pattern.permute.xlu0 0
      %1448 = vperm.xlu0 %1447, %v1322
      %v1449 = vpop.permute.xlu0 %1448
      %1452 = vset.pattern.permute.xlu0 0
      %1453 = vperm.xlu0 %1452, %v1323
      %v1454 = vpop.permute.xlu0 %1453
      %1457 = vset.pattern.permute.xlu0 0
      %1458 = vperm.xlu0 %1457, %v1324
      %v1459 = vpop.permute.xlu0 %1458
      %1462 = vset.pattern.permute.xlu0 0
      %1463 = vperm.xlu0 %1462, %v1325
      %v1464 = vpop.permute.xlu0 %1463
      %1467 = vset.pattern.permute.xlu0 0
      %1468 = vperm.xlu0 %1467, %v1326
      %v1469 = vpop.permute.xlu0 %1468
      %1472 = vset.pattern.permute.xlu0 0
      %1473 = vperm.xlu0 %1472, %v1327
      %v1474 = vpop.permute.xlu0 %1473
      %1477 = vset.pattern.permute.xlu0 0
      %1478 = vperm.xlu0 %1477, %v1328
      %v1479 = vpop.permute.xlu0 %1478
      %1482 = vset.pattern.permute.xlu0 0
      %1483 = vperm.xlu0 %1482, %v1329
      %v1484 = vpop.permute.xlu0 %1483
      %1487 = vset.pattern.permute.xlu0 0
      %1488 = vperm.xlu0 %1487, %v1330
      %v1489 = vpop.permute.xlu0 %1488
      %v1523 = vunpack.c.l.b16 %v1267
      %v1524 = vunpack.c.l.b16 %v1268
      %v1525 = vunpack.c.l.b16 %v1269
      %v1526 = vunpack.c.l.b16 %v1270
      %v1527 = vunpack.c.l.b16 %v1271
      %v1528 = vunpack.c.l.b16 %v1272
      %v1529 = vunpack.c.l.b16 %v1273
      %v1530 = vunpack.c.l.b16 %v1274
      %v1531 = vunpack.c.l.b16 %v1275
      %v1532 = vunpack.c.l.b16 %v1276
      %v1533 = vunpack.c.l.b16 %v1277
      %v1534 = vunpack.c.l.b16 %v1278
      %v1535 = vunpack.c.l.b16 %v1279
      %v1536 = vunpack.c.l.b16 %v1280
      %v1537 = vunpack.c.l.b16 %v1281
      %v1538 = vunpack.c.l.b16 %v1282
      %v1539 = vunpack.c.l.b16 %v1283
      %v1540 = vunpack.c.l.b16 %v1284
      %v1541 = vunpack.c.l.b16 %v1285
      %v1542 = vunpack.c.l.b16 %v1286
      %v1543 = vunpack.c.l.b16 %v1287
      %v1544 = vunpack.c.l.b16 %v1288
      %v1545 = vunpack.c.l.b16 %v1289
      %v1546 = vunpack.c.l.b16 %v1290
      %v1547 = vunpack.c.l.b16 %v1291
      %v1548 = vunpack.c.l.b16 %v1292
      %v1549 = vunpack.c.l.b16 %v1293
      %v1550 = vunpack.c.l.b16 %v1294
      %v1551 = vunpack.c.l.b16 %v1295
      %v1552 = vunpack.c.l.b16 %v1296
      %v1553 = vunpack.c.l.b16 %v1297
      %v1554 = vunpack.c.l.b16 %v1298
      %v1555 = vpack.c.b16 %v1524, %v1523
      %v1556 = vpack.c.b16 %v1526, %v1525
      %v1557 = vpack.c.b16 %v1528, %v1527
      %v1558 = vpack.c.b16 %v1530, %v1529
      %v1559 = vpack.c.b16 %v1532, %v1531
      %v1560 = vpack.c.b16 %v1534, %v1533
      %v1561 = vpack.c.b16 %v1536, %v1535
      %v1562 = vpack.c.b16 %v1538, %v1537
      %v1563 = vpack.c.b16 %v1540, %v1539
      %v1564 = vpack.c.b16 %v1542, %v1541
      %v1565 = vpack.c.b16 %v1544, %v1543
      %v1566 = vpack.c.b16 %v1546, %v1545
      %v1567 = vpack.c.b16 %v1548, %v1547
      %v1568 = vpack.c.b16 %v1550, %v1549
      %v1569 = vpack.c.b16 %v1552, %v1551
      %v1570 = vpack.c.b16 %v1554, %v1553
      %1587 = vmatprep.subr.bf16.mxu0 %v1252
      %1588 = vmatpush1.bf16.msra.mxu0 %v1251
      %1589 = vmatprep.subr.bf16.mxu0 %v1254
      %1590 = vmatpush1.bf16.msra.mxu0 %v1253
      %1591 = vmatprep.subr.bf16.mxu0 %v1256
      %1592 = vmatpush1.bf16.msra.mxu0 %v1255
      %1593 = vmatprep.subr.bf16.mxu0 %v1258
      %1594 = vmatpush1.bf16.msra.mxu0 %v1257
      %1595 = vmatprep.subr.bf16.mxu0 %v1260
      %1596 = vmatpush1.bf16.msra.mxu0 %v1259
      %1597 = vmatprep.subr.bf16.mxu0 %v1262
      %1598 = vmatpush1.bf16.msra.mxu0 %v1261
      %1599 = vmatprep.subr.bf16.mxu0 %v1264
      %1600 = vmatpush1.bf16.msra.mxu0 %v1263
      %1601 = vmatprep.subr.bf16.mxu0 %v1266
      %1602 = vmatpush1.bf16.msra.mxu0 %v1265
      %1603 = vmatprep.subr.bf16.mxu0 0
      %1604 = vmatpush1.bf16.msra.mxu0 0
      %1605 = vmatprep.subr.bf16.mxu0 0
      %1606 = vmatpush1.bf16.msra.mxu0 0
      %1607 = vmatprep.subr.bf16.mxu0 0
      %1608 = vmatpush1.bf16.msra.mxu0 0
      %1609 = vmatprep.subr.bf16.mxu0 0
      %1610 = vmatpush1.bf16.msra.mxu0 0
      %1611 = vmatprep.subr.bf16.mxu0 0
      %1612 = vmatpush1.bf16.msra.mxu0 0
      %1613 = vmatprep.subr.bf16.mxu0 0
      %1614 = vmatpush1.bf16.msra.mxu0 0
      %1615 = vmatprep.subr.bf16.mxu0 0
      %1616 = vmatpush1.bf16.msra.mxu0 0
      %1617 = vmatprep.subr.bf16.mxu0 0
      %1618 = vmatpush1.bf16.msra.mxu0 0
      %1619 = vmatprep.mubr.bf16.mxu0 0
      %1620 = vmatmul.mubr.bf16.gmra.mrb[0].mxu0 %v1555
      %v1621 = vpop.f32.mrb[0].mxu0
      %v1622 = vadd.f32 %v1334, %v1621
      %v1623 = vpop.f32.mrb[0].mxu0
      %v1624 = vadd.f32 %v1334, %v1623
      %v1625 = vpop.f32.mrb[0].mxu0
      %v1626 = vadd.f32 %v1339, %v1625
      %v1627 = vpop.f32.mrb[0].mxu0
      %v1628 = vadd.f32 %v1339, %v1627
      %1629 = vmatprep.mubr.bf16.mxu0 0
      %1630 = vmatmul.mubr.bf16.gmra.mrb[0].mxu0 %v1556
      %v1631 = vpop.f32.mrb[0].mxu0
      %v1632 = vadd.f32 %v1344, %v1631
      %v1633 = vpop.f32.mrb[0].mxu0
      %v1634 = vadd.f32 %v1344, %v1633
      %v1635 = vpop.f32.mrb[0].mxu0
      %v1636 = vadd.f32 %v1349, %v1635
      %v1637 = vpop.f32.mrb[0].mxu0
      %v1638 = vadd.f32 %v1349, %v1637
      %1639 = vmatprep.mubr.bf16.mxu0 0
      %1640 = vmatmul.mubr.bf16.gmra.mrb[0].mxu0 %v1557
      %v1641 = vpop.f32.mrb[0].mxu0
      %v1642 = vadd.f32 %v1354, %v1641
      %v1643 = vpop.f32.mrb[0].mxu0
      %v1644 = vadd.f32 %v1354, %v1643
      %v1645 = vpop.f32.mrb[0].mxu0
      %v1646 = vadd.f32 %v1359, %v1645
      %v1647 = vpop.f32.mrb[0].mxu0
      %v1648 = vadd.f32 %v1359, %v1647
      %1649 = vmatprep.mubr.bf16.mxu0 0
      %1650 = vmatmul.mubr.bf16.gmra.mrb[0].mxu0 %v1558
      %v1651 = vpop.f32.mrb[0].mxu0
      %v1652 = vadd.f32 %v1364, %v1651
      %v1653 = vpop.f32.mrb[0].mxu0
      %v1654 = vadd.f32 %v1364, %v1653
      %v1655 = vpop.f32.mrb[0].mxu0
      %v1656 = vadd.f32 %v1369, %v1655
      %v1657 = vpop.f32.mrb[0].mxu0
      %v1658 = vadd.f32 %v1369, %v1657
      %1659 = vmatprep.mubr.bf16.mxu0 0
      %1660 = vmatmul.mubr.bf16.gmra.mrb[0].mxu0 %v1559
      %v1661 = vpop.f32.mrb[0].mxu0
      %v1662 = vadd.f32 %v1374, %v1661
      %v1663 = vpop.f32.mrb[0].mxu0
      %v1664 = vadd.f32 %v1374, %v1663
      %v1665 = vpop.f32.mrb[0].mxu0
      %v1666 = vadd.f32 %v1379, %v1665
      %v1667 = vpop.f32.mrb[0].mxu0
      %v1668 = vadd.f32 %v1379, %v1667
      %1669 = vmatprep.mubr.bf16.mxu0 0
      %1670 = vmatmul.mubr.bf16.gmra.mrb[0].mxu0 %v1560
      %v1671 = vpop.f32.mrb[0].mxu0
      %v1672 = vadd.f32 %v1384, %v1671
      %v1673 = vpop.f32.mrb[0].mxu0
      %v1674 = vadd.f32 %v1384, %v1673
      %v1675 = vpop.f32.mrb[0].mxu0
      %v1676 = vadd.f32 %v1389, %v1675
      %v1677 = vpop.f32.mrb[0].mxu0
      %v1678 = vadd.f32 %v1389, %v1677
      %1679 = vmatprep.mubr.bf16.mxu0 0
      %1680 = vmatmul.mubr.bf16.gmra.mrb[0].mxu0 %v1561
      %v1681 = vpop.f32.mrb[0].mxu0
      %v1682 = vadd.f32 %v1394, %v1681
      %v1683 = vpop.f32.mrb[0].mxu0
      %v1684 = vadd.f32 %v1394, %v1683
      %v1685 = vpop.f32.mrb[0].mxu0
      %v1686 = vadd.f32 %v1399, %v1685
      %v1687 = vpop.f32.mrb[0].mxu0
      %v1688 = vadd.f32 %v1399, %v1687
      %1689 = vmatprep.mubr.bf16.mxu0 0
      %1690 = vmatmul.mubr.bf16.gmra.mrb[0].mxu0 %v1562
      %v1691 = vpop.f32.mrb[0].mxu0
      %v1692 = vadd.f32 %v1404, %v1691
      %v1693 = vpop.f32.mrb[0].mxu0
      %v1694 = vadd.f32 %v1404, %v1693
      %v1695 = vpop.f32.mrb[0].mxu0
      %v1696 = vadd.f32 %v1409, %v1695
      %v1697 = vpop.f32.mrb[0].mxu0
      %v1698 = vadd.f32 %v1409, %v1697
      %1699 = vmatprep.mubr.bf16.mxu0 0
      %1700 = vmatmul.mubr.bf16.gmra.mrb[0].mxu0 %v1563
      %v1701 = vpop.f32.mrb[0].mxu0
      %v1702 = vadd.f32 %v1414, %v1701
      %v1703 = vpop.f32.mrb[0].mxu0
      %v1704 = vadd.f32 %v1414, %v1703
      %v1705 = vpop.f32.mrb[0].mxu0
      %v1706 = vadd.f32 %v1419, %v1705
      %v1707 = vpop.f32.mrb[0].mxu0
      %v1708 = vadd.f32 %v1419, %v1707
      %1709 = vmatprep.mubr.bf16.mxu0 0
      %1710 = vmatmul.mubr.bf16.gmra.mrb[0].mxu0 %v1564
      %v1711 = vpop.f32.mrb[0].mxu0
      %v1712 = vadd.f32 %v1424, %v1711
      %v1713 = vpop.f32.mrb[0].mxu0
      %v1714 = vadd.f32 %v1424, %v1713
      %v1715 = vpop.f32.mrb[0].mxu0
      %v1716 = vadd.f32 %v1429, %v1715
      %v1717 = vpop.f32.mrb[0].mxu0
      %v1718 = vadd.f32 %v1429, %v1717
      %1719 = vmatprep.mubr.bf16.mxu0 0
      %1720 = vmatmul.mubr.bf16.gmra.mrb[0].mxu0 %v1565
      %v1721 = vpop.f32.mrb[0].mxu0
      %v1722 = vadd.f32 %v1434, %v1721
      %v1723 = vpop.f32.mrb[0].mxu0
      %v1724 = vadd.f32 %v1434, %v1723
      %v1725 = vpop.f32.mrb[0].mxu0
      %v1726 = vadd.f32 %v1439, %v1725
      %v1727 = vpop.f32.mrb[0].mxu0
      %v1728 = vadd.f32 %v1439, %v1727
      %1729 = vmatprep.mubr.bf16.mxu0 0
      %1730 = vmatmul.mubr.bf16.gmra.mrb[0].mxu0 %v1566
      %v1731 = vpop.f32.mrb[0].mxu0
      %v1732 = vadd.f32 %v1444, %v1731
      %v1733 = vpop.f32.mrb[0].mxu0
      %v1734 = vadd.f32 %v1444, %v1733
      %v1735 = vpop.f32.mrb[0].mxu0
      %v1736 = vadd.f32 %v1449, %v1735
      %v1737 = vpop.f32.mrb[0].mxu0
      %v1738 = vadd.f32 %v1449, %v1737
      %1739 = vmatprep.mubr.bf16.mxu0 0
      %1740 = vmatmul.mubr.bf16.gmra.mrb[0].mxu0 %v1567
      %v1741 = vpop.f32.mrb[0].mxu0
      %v1742 = vadd.f32 %v1454, %v1741
      %v1743 = vpop.f32.mrb[0].mxu0
      %v1744 = vadd.f32 %v1454, %v1743
      %v1745 = vpop.f32.mrb[0].mxu0
      %v1746 = vadd.f32 %v1459, %v1745
      %v1747 = vpop.f32.mrb[0].mxu0
      %v1748 = vadd.f32 %v1459, %v1747
      %1749 = vmatprep.mubr.bf16.mxu0 0
      %1750 = vmatmul.mubr.bf16.gmra.mrb[0].mxu0 %v1568
      %v1751 = vpop.f32.mrb[0].mxu0
      %v1752 = vadd.f32 %v1464, %v1751
      %v1753 = vpop.f32.mrb[0].mxu0
      %v1754 = vadd.f32 %v1464, %v1753
      %v1755 = vpop.f32.mrb[0].mxu0
      %v1756 = vadd.f32 %v1469, %v1755
      %v1757 = vpop.f32.mrb[0].mxu0
      %v1758 = vadd.f32 %v1469, %v1757
      %1759 = vmatprep.mubr.bf16.mxu0 0
      %1760 = vmatmul.mubr.bf16.gmra.mrb[0].mxu0 %v1569
      %v1761 = vpop.f32.mrb[0].mxu0
      %v1762 = vadd.f32 %v1474, %v1761
      %v1763 = vpop.f32.mrb[0].mxu0
      %v1764 = vadd.f32 %v1474, %v1763
      %v1765 = vpop.f32.mrb[0].mxu0
      %v1766 = vadd.f32 %v1479, %v1765
      %v1767 = vpop.f32.mrb[0].mxu0
      %v1768 = vadd.f32 %v1479, %v1767
      %1769 = vmatprep.mubr.bf16.mxu0 0
      %1770 = vmatmul.mubr.bf16.gmra.mrb[0].mxu0 %v1570
      %v1771 = vpop.f32.mrb[0].mxu0
      %v1772 = vadd.f32 %v1484, %v1771
      %v1773 = vpop.f32.mrb[0].mxu0
      %v1774 = vadd.f32 %v1484, %v1773
      %v1775 = vpop.f32.mrb[0].mxu0
      %v1776 = vadd.f32 %v1489, %v1775
      %v1777 = vpop.f32.mrb[0].mxu0
      %v1778 = vadd.f32 %v1489, %v1777
      %1779 = vdwg.mxu0
      %v1780 = vmax.f32 %v1622, 0.0
      %v1781 = vmax.f32 %v1624, 0.0
      %v1782 = vmax.f32 %v1626, 0.0
      %v1783 = vmax.f32 %v1628, 0.0
      %v1784 = vmax.f32 %v1632, 0.0
      %v1785 = vmax.f32 %v1634, 0.0
      %v1786 = vmax.f32 %v1636, 0.0
      %v1787 = vmax.f32 %v1638, 0.0
      %v1788 = vmax.f32 %v1642, 0.0
      %v1789 = vmax.f32 %v1644, 0.0
      %v1790 = vmax.f32 %v1646, 0.0
      %v1791 = vmax.f32 %v1648, 0.0
      %v1792 = vmax.f32 %v1652, 0.0
      %v1793 = vmax.f32 %v1654, 0.0
      %v1794 = vmax.f32 %v1656, 0.0
      %v1795 = vmax.f32 %v1658, 0.0
      %v1796 = vmax.f32 %v1662, 0.0
      %v1797 = vmax.f32 %v1664, 0.0
      %v1798 = vmax.f32 %v1666, 0.0
      %v1799 = vmax.f32 %v1668, 0.0
      %v1800 = vmax.f32 %v1672, 0.0
      %v1801 = vmax.f32 %v1674, 0.0
      %v1802 = vmax.f32 %v1676, 0.0
      %v1803 = vmax.f32 %v1678, 0.0
      %v1804 = vmax.f32 %v1682, 0.0
      %v1805 = vmax.f32 %v1684, 0.0
      %v1806 = vmax.f32 %v1686, 0.0
      %v1807 = vmax.f32 %v1688, 0.0
      %v1808 = vmax.f32 %v1692, 0.0
      %v1809 = vmax.f32 %v1694, 0.0
      %v1810 = vmax.f32 %v1696, 0.0
      %v1811 = vmax.f32 %v1698, 0.0
      %v1812 = vmax.f32 %v1702, 0.0
      %v1813 = vmax.f32 %v1704, 0.0
      %v1814 = vmax.f32 %v1706, 0.0
      %v1815 = vmax.f32 %v1708, 0.0
      %v1816 = vmax.f32 %v1712, 0.0
      %v1817 = vmax.f32 %v1714, 0.0
      %v1818 = vmax.f32 %v1716, 0.0
      %v1819 = vmax.f32 %v1718, 0.0
      %v1820 = vmax.f32 %v1722, 0.0
      %v1821 = vmax.f32 %v1724, 0.0
      %v1822 = vmax.f32 %v1726, 0.0
      %v1823 = vmax.f32 %v1728, 0.0
      %v1824 = vmax.f32 %v1732, 0.0
      %v1825 = vmax.f32 %v1734, 0.0
      %v1826 = vmax.f32 %v1736, 0.0
      %v1827 = vmax.f32 %v1738, 0.0
      %v1828 = vmax.f32 %v1742, 0.0
      %v1829 = vmax.f32 %v1744, 0.0
      %v1830 = vmax.f32 %v1746, 0.0
      %v1831 = vmax.f32 %v1748, 0.0
      %v1832 = vmax.f32 %v1752, 0.0
      %v1833 = vmax.f32 %v1754, 0.0
      %v1834 = vmax.f32 %v1756, 0.0
      %v1835 = vmax.f32 %v1758, 0.0
      %v1836 = vmax.f32 %v1762, 0.0
      %v1837 = vmax.f32 %v1764, 0.0
      %v1838 = vmax.f32 %v1766, 0.0
      %v1839 = vmax.f32 %v1768, 0.0
      %v1840 = vmax.f32 %v1772, 0.0
      %v1841 = vmax.f32 %v1774, 0.0
      %v1842 = vmax.f32 %v1776, 0.0
      %v1843 = vmax.f32 %v1778, 0.0
      %v1844 = vpack.c.bf16 %v1782, %v1780
      %v1845 = vpack.c.bf16 %v1783, %v1781
      %v1846 = vpack.c.bf16 %v1786, %v1784
      %v1847 = vpack.c.bf16 %v1787, %v1785
      %v1848 = vpack.c.bf16 %v1790, %v1788
      %v1849 = vpack.c.bf16 %v1791, %v1789
      %v1850 = vpack.c.bf16 %v1794, %v1792
      %v1851 = vpack.c.bf16 %v1795, %v1793
      %v1852 = vpack.c.bf16 %v1798, %v1796
      %v1853 = vpack.c.bf16 %v1799, %v1797
      %v1854 = vpack.c.bf16 %v1802, %v1800
      %v1855 = vpack.c.bf16 %v1803, %v1801
      %v1856 = vpack.c.bf16 %v1806, %v1804
      %v1857 = vpack.c.bf16 %v1807, %v1805
      %v1858 = vpack.c.bf16 %v1810, %v1808
      %v1859 = vpack.c.bf16 %v1811, %v1809
      %v1860 = vpack.c.bf16 %v1814, %v1812
      %v1861 = vpack.c.bf16 %v1815, %v1813
      %v1862 = vpack.c.bf16 %v1818, %v1816
      %v1863 = vpack.c.bf16 %v1819, %v1817
      %v1864 = vpack.c.bf16 %v1822, %v1820
      %v1865 = vpack.c.bf16 %v1823, %v1821
      %v1866 = vpack.c.bf16 %v1826, %v1824
      %v1867 = vpack.c.bf16 %v1827, %v1825
      %v1868 = vpack.c.bf16 %v1830, %v1828
      %v1869 = vpack.c.bf16 %v1831, %v1829
      %v1870 = vpack.c.bf16 %v1834, %v1832
      %v1871 = vpack.c.bf16 %v1835, %v1833
      %v1872 = vpack.c.bf16 %v1838, %v1836
      %v1873 = vpack.c.bf16 %v1839, %v1837
      %v1874 = vpack.c.bf16 %v1842, %v1840
      %v1875 = vpack.c.bf16 %v1843, %v1841
      %v1876 = vld [vmem:[%s11] sm:$0x3]
      %v1877 = vld [vmem:[#allocation2] sm:$0x1]
      %1879 = vset.pattern.permute.xlu0 0
      %1880 = vperm.xlu0 %1879, %v1877
      %v1881 = vpop.permute.xlu0 %1880
      %v1883 = vlaneseq
      %v1884 = vshrl.u32 %v1883, 7
      %v1885 = vsub.s32 0, %v1884
      %v1886 = vrot.slane %v1881, %v1885
      %v1889 = vunpack.c.l.s4 1966171168
      %v1890 = vunpack.c.0.s8 %v1889
      %v1891 = vlaneseq
      %v1892 = vshrl.u32 %v1891, 7
      %v1893 = vsub.s32 %v1890, %v1892
      %v1894 = vrot.slane %v1876, %v1893
      %v1895 = vcombine.high %v1894, %v1894
      %v1897 = vunpack.c.l.s4 1966171168
      %v1898 = vunpack.c.0.s8 %v1897
      %v1899 = vlaneseq
      %v1900 = vshrl.u32 %v1899, 7
      %v1901 = vsub.s32 %v1898, %v1900
      %v1902 = vrot.slane %v1894, %v1901
      %v1904 = vunpack.c.l.s4 1966171168
      %v1905 = vunpack.c.0.s8 %v1904
      %v1906 = vlaneseq
      %v1907 = vshrl.u32 %v1906, 7
      %v1908 = vsub.s32 %v1905, %v1907
      %v1909 = vrot.slane %v1895, %v1908
      %1912 = vmatprep.subr.bf16.mxu0 %v1845
      %1913 = vmatpush1.bf16.msra.mxu0 %v1844
      %1914 = vmatprep.subr.bf16.mxu0 %v1847
      %1915 = vmatpush1.bf16.msra.mxu0 %v1846
      %1916 = vmatprep.subr.bf16.mxu0 %v1849
      %1917 = vmatpush1.bf16.msra.mxu0 %v1848
      %1918 = vmatprep.subr.bf16.mxu0 %v1851
      %1919 = vmatpush1.bf16.msra.mxu0 %v1850
      %1920 = vmatprep.subr.bf16.mxu0 %v1853
      %1921 = vmatpush1.bf16.msra.mxu0 %v1852
      %1922 = vmatprep.subr.bf16.mxu0 %v1855
      %1923 = vmatpush1.bf16.msra.mxu0 %v1854
      %1924 = vmatprep.subr.bf16.mxu0 %v1857
      %1925 = vmatpush1.bf16.msra.mxu0 %v1856
      %1926 = vmatprep.subr.bf16.mxu0 %v1859
      %1927 = vmatpush1.bf16.msra.mxu0 %v1858
      %1928 = vmatprep.subr.bf16.mxu0 %v1861
      %1929 = vmatpush1.bf16.msra.mxu0 %v1860
      %1930 = vmatprep.subr.bf16.mxu0 %v1863
      %1931 = vmatpush1.bf16.msra.mxu0 %v1862
      %1932 = vmatprep.subr.bf16.mxu0 %v1865
      %1933 = vmatpush1.bf16.msra.mxu0 %v1864
      %1934 = vmatprep.subr.bf16.mxu0 %v1867
      %1935 = vmatpush1.bf16.msra.mxu0 %v1866
      %1936 = vmatprep.subr.bf16.mxu0 %v1869
      %1937 = vmatpush1.bf16.msra.mxu0 %v1868
      %1938 = vmatprep.subr.bf16.mxu0 %v1871
      %1939 = vmatpush1.bf16.msra.mxu0 %v1870
      %1940 = vmatprep.subr.bf16.mxu0 %v1873
      %1941 = vmatpush1.bf16.msra.mxu0 %v1872
      %1942 = vmatprep.subr.bf16.mxu0 %v1875
      %1943 = vmatpush1.bf16.msra.mxu0 %v1874
      %1944 = vmatprep.mubr.bf16.mxu0 %v1909
      %1945 = vmatmul.mubr.bf16.gmra.mrb[0].mxu0 %v1902
      %v1946 = vpop.f32.mrb[0].mxu0
      %v1947 = vadd.f32 %v1886, %v1946
      %v1948 = vpop.f32.mrb[0].mxu0
      %v1949 = vadd.f32 %v1886, %v1948
      %v1950 = vpop.f32.mrb[0].mxu0
      %v1951 = vpop.f32.mrb[0].mxu0
      %1952 = vdwg.mxu0
      %v1953 = vxor.u32 %v1947, 2147483648
      %v1954 = vxor.u32 %v1949, 2147483648
      %v1955 = vmul.f32 %v1953, 1.442695
      %v1956 = vpow.pop %v1955
      %v1957 = vmul.f32 %v1954, 1.442695
      %v1958 = vpow.pop %v1957
      %v1959 = vadd.f32 %v1956, 1.0
      %v1960 = vadd.f32 %v1958, 1.0
      %v1961 = vrcp.pop %v1959
      %v1962 = vmul.f32 1.0, %v1961
      %v1963 = vrcp.pop %v1960
      %v1964 = vmul.f32 1.0, %v1963
      %v1967 = vcombine.low %v1962, %v1964
      %v1969 = vunpack.c.l.s4 1966171168
      %v1970 = vunpack.c.0.s8 %v1969
      %v1971 = vlaneseq
      %v1972 = vshrl.u32 %v1971, 7
      %v1973 = vsub.s32 %v1970, %v1972
      %v1974 = vrot.slane %v1967, %v1973
      %v1976 = vunpack.c.l.s4 1966171168
      %v1977 = vunpack.c.0.s8 %v1976
      %v1978 = vlaneseq
      %v1979 = vshrl.u32 %v1978, 7
      %v1980 = vsub.s32 %v1977, %v1979
      %v1981 = vrot.slane %v1974, %v1980
      %v1983 = vlaneseq
      %vm1984 = vcmp.ge.s32.totalorder %v1983, 0
      %vm1985 = vcmp.lt.s32.totalorder %v1983, 256
      %vm1986 = vmand %vm1984, %vm1985
      %1987 = vst.msk [vmem:[%s462] sm:$0x3] %vm1986, %v1981
      %s1988 = smul.u32 2, %s26
      %p1989 = scmp.lt.s32.totalorder %s1988, 3
      %s1990 = scalar_select %p1989, %s1988, 3
      %s1991 = scalar_lea.vmem %s13, %s1990
      // Predicated region
      $region73: #{custom_model_forward.1} parent=71 // pred_check
        %p1992 = pneg %p322
      $region74: #{custom_model_forward.1} parent=71 // pred_check_branch
        %1994 = sbr.rel (%p1992) target = $region76
      $region75: #{custom_model_forward.1} parent=71 // pred_region
        %s1995 = smul.u32 2, %s26
      $region76: #{custom_model_forward.1} parent=71 // pred_fallthru
        _
    $region72: #{custom_model_forward.1} parent=5 // pred_fallthru
      _
    %p1996 = scmp.le.s32.totalorder 2, %s21
    // Predicated region
    $region77: #{custom_model_forward.1} parent=5 // pred_check
      %p1997 = pneg %p1996
    $region78: #{custom_model_forward.1} parent=5 // pred_check_branch
      %1999 = sbr.rel (%p1997) target = $region80
    $region79: #{custom_model_forward.1} parent=5 // pred_region
      %s2000 = ssub.s32 %s21, 2
      // Predicated region
      $region81: #{custom_model_forward.1} parent=79 // pred_check
        %p2001 = pneg %p328
      $region82: #{custom_model_forward.1} parent=79 // pred_check_branch
        %2003 = sbr.rel (%p2001) target = $region84
      $region83: #{custom_model_forward.1} parent=79 // pred_region
        %s2004 = smul.u32 2, %s27
        %p2005 = scmp.lt.s32.totalorder %s2004, 3
        %s2006 = scalar_select %p2005, %s2004, 3
        %s2007 = scalar_lea.vmem %s13, %s2006
      $region84: #{custom_model_forward.1} parent=79 // pred_fallthru
        _
    $region80: #{custom_model_forward.1} parent=5 // pred_fallthru
      _
  $region6: #{custom_model_forward.1} parent=0 // loop_footer
    %s25 = sadd.s32 1, %s21
  $region7: #{custom_model_forward.1} parent=0 // loop_footer_branch
    %20 = sbr.rel target = $region3
  $region8: #{custom_model_forward.1} parent=0 // loop_exit
    _

</llo_original>
